<compile_context>
chip_gen: v7x
topology: tpu7x:2x2x1
jax: 0.10.0
libtpu: 0.0.40
codegen_flags: <defaults>
</compile_context>

<pallas_src>
import jax
import jax.numpy as jnp
from jax.experimental import pallas as pl
from jax.experimental.pallas import tpu as pltpu


def gcn_kernel(a_ref, x_ref, w1_ref, w2_ref, p_ref, o_ref):
    G, N, F = x_ref.shape
    H = w1_ref.shape[1]
    cdt = w1_ref.dtype  # matmul operand dtype (f32 or bf16); accumulation is always f32

    # Packed small params: row 0 = b1, row 1 = b2, row 2 = W_dense^T, row 3[0] = b_dense.
    b1 = p_ref[0:1, :]          # (1, H)
    b2 = p_ref[1:2, :]          # (1, H)
    wd = p_ref[2:3, :]          # (1, H)
    bd = p_ref[3:4, 0:1]        # (1, 1)

    a = a_ref[...]              # (G, N, N) normalized adjacencies for this block
    x = x_ref[...]              # (G, N, F) node features

    # ---- GraphConv 1: relu((A @ X) @ W1 + b1), aggregate-first since F < H ----
    ax = jnp.einsum("gnm,gmf->gnf", a, x,
                    preferred_element_type=jnp.float32)                     # (G, N, F)
    h1 = jnp.dot(ax.reshape(G * N, F).astype(cdt), w1_ref[...],
                 preferred_element_type=jnp.float32) + b1                   # (G*N, H)
    h1 = jnp.maximum(h1, 0.0)

    # ---- GraphConv 2: relu((A @ H1) @ W2 + b2)  (same op order as reference) ----
    ah = jnp.einsum("gnm,gmh->gnh", a, h1.reshape(G, N, H).astype(cdt),
                    preferred_element_type=jnp.float32)                     # (G, N, H)
    h2 = jnp.dot(ah.reshape(G * N, H).astype(cdt), w2_ref[...],
                 preferred_element_type=jnp.float32) + b2                   # (G*N, H)
    h2 = jnp.maximum(h2, 0.0).reshape(G, N, H)

    # ---- dgl.mean_nodes + Linear(h_feats -> 1), fused & lane-dense ----
    hg = jnp.mean(h2, axis=1)                                               # (G, H)
    scores = jnp.einsum("ah,gh->ag", wd, hg,
                        preferred_element_type=jnp.float32)                 # (1, G)
    o_ref[...] = scores + bd                                                # lane-dense row


def _choose_graphs_per_block(B, N, F, H, itemsize,
                             input_budget_bytes=24 << 20, target_rows=256):
    """Largest divisor G of B whose block working set fits the budget; stop growing
    once G*N reaches the MXU-width target (256 covers v6e/v7x; >=128 covers v5e)."""
    per_graph = (2 * (N * N + N * F) * itemsize   # double-buffered A, X input blocks
                 + 3 * N * H * 4)                 # rough f32 h1/ah/h2 body footprint
    best = 1
    for g in range(1, B + 1):
        if B % g:
            continue
        if g * per_graph > input_budget_bytes:
            break
        best = g
        if g * N >= target_rows:
            break
    return best


def gcn_forward(adj_norm, x, params, graphs_per_block=None,
                compute_dtype=jnp.float32):
    """adj_norm: [B,N,N], x: [B,N,F]. Returns [B] (squeezed per-graph prediction)."""
    w1, b1, w2, b2, wd, bd = params
    B, N, F = x.shape
    H = w1.shape[1]
    itemsize = jnp.dtype(compute_dtype).itemsize

    if graphs_per_block is None:
        graphs_per_block = _choose_graphs_per_block(B, N, F, H, itemsize)
    G = graphs_per_block
    assert B % G == 0, "batch size must be divisible by graphs_per_block"
    num_blocks = B // G

    # MXU operands optionally in bf16 (v6e/v7x); biases / relu / mean / head stay f32.
    a_in = adj_norm.astype(compute_dtype)
    x_in = x.astype(compute_dtype)
    w1_in = w1.astype(compute_dtype)
    w2_in = w2.astype(compute_dtype)

    # Pack the tiny per-layer params into one (4, H) f32 array (one resident block).
    packed = jnp.zeros((4, H), jnp.float32)
    packed = packed.at[0].set(b1.reshape(H).astype(jnp.float32))
    packed = packed.at[1].set(b2.reshape(H).astype(jnp.float32))
    packed = packed.at[2].set(wd.reshape(H).astype(jnp.float32))
    packed = packed.at[3, 0].set(bd.reshape(()).astype(jnp.float32))

    # VMEM sizing: bump the scoped limit only if the working set nears the defaults
    # (16 MiB v5e / 32 MiB v6e,v7x scoped; 64 MiB physical on v7x -> cap at 48 MiB).
    per_graph_bytes = 2 * (N * N + N * F) * itemsize + 3 * N * H * 4
    weight_bytes = 2 * ((F * H + H * H) * itemsize + 4 * H * 4)
    est_bytes = G * per_graph_bytes + weight_bytes + 2 * num_blocks * G * 4
    vmem_limit = None
    if est_bytes > (12 << 20):
        vmem_limit = int(min(2 * est_bytes, 48 << 20))

    out = pl.pallas_call(
        gcn_kernel,
        out_shape=jax.ShapeDtypeStruct((num_blocks, G), jnp.float32),
        grid_spec=pltpu.PrefetchScalarGridSpec(
            num_scalar_prefetch=0,
            grid=(num_blocks,),
            in_specs=[
                pl.BlockSpec((G, N, N), lambda i: (i, 0, 0)),   # adjacency block
                pl.BlockSpec((G, N, F), lambda i: (i, 0, 0)),   # feature block
                pl.BlockSpec((F, H), lambda i: (0, 0)),         # W1 (resident)
                pl.BlockSpec((H, H), lambda i: (0, 0)),         # W2 (resident)
                pl.BlockSpec((4, H), lambda i: (0, 0)),         # packed b1/b2/Wd/bd
            ],
            out_specs=pl.BlockSpec((1, G), lambda i: (i, 0)),   # lane-dense row
        ),
        compiler_params=pltpu.CompilerParams(
            dimension_semantics=("parallel",),
            vmem_limit_bytes=vmem_limit),
    )(a_in, x_in, w1_in, w2_in, packed)

    return out.reshape(B)   # == h.squeeze() on a [B, 1] tensor


def gcn_reference(adj_norm, x, params):
    """Pure-JAX reference for correctness checking."""
    w1, b1, w2, b2, wd, bd = params
    h = jax.nn.relu(jnp.einsum("bij,bjf->bif", adj_norm, x) @ w1 + b1)
    h = jax.nn.relu(jnp.einsum("bij,bjf->bif", adj_norm, h) @ w2 + b2)
    hg = jnp.mean(h, axis=1)                 # dgl.mean_nodes -> [B, H]
    out = hg @ wd + bd                       # [B, 1]
    return out.squeeze(-1)                   # [B]


def build_graph_batch(key, B, N, F):
    """Deterministic random batch of graphs: normalized dense adjacency + features."""
    k_adj, k_feat = jax.random.split(key)
    a = jax.random.bernoulli(k_adj, p=0.3, shape=(B, N, N)).astype(jnp.float32)
    a = jnp.maximum(a, jnp.transpose(a, (0, 2, 1)))          # symmetrize (undirected)
    eye = jnp.eye(N, dtype=jnp.float32)[None]
    a = jnp.maximum(a, eye)                                   # add self-loops
    deg = jnp.sum(a, axis=-1)                                 # [B, N]
    dinv = 1.0 / jnp.sqrt(jnp.maximum(deg, 1.0))
    adj_norm = dinv[:, :, None] * a * dinv[:, None, :]        # D^-1/2 A D^-1/2
    x = jax.random.normal(k_feat, (B, N, F), dtype=jnp.float32)
    return adj_norm, x


def init_params(key, in_feats, h_feats):
    ks = jax.random.split(key, 4)
    w1 = jax.random.normal(ks[0], (in_feats, h_feats), jnp.float32) / jnp.sqrt(in_feats)
    b1 = jnp.zeros((h_feats,), jnp.float32)
    w2 = jax.random.normal(ks[1], (h_feats, h_feats), jnp.float32) / jnp.sqrt(h_feats)
    b2 = jnp.zeros((h_feats,), jnp.float32)
    wd = jax.random.normal(ks[2], (h_feats, 1), jnp.float32) / jnp.sqrt(h_feats)
    bd = jax.random.normal(ks[3], (1,), jnp.float32) * 0.01
    return (w1, b1, w2, b2, wd, bd)


if __name__ == "__main__":
    B, N, IN_FEATS, H_FEATS = 8, 16, 8, 32   # G=B=8 -> single grid step at this size

    key = jax.random.PRNGKey(0)
    k_graph, k_param = jax.random.split(key)
    adj_norm, x = build_graph_batch(k_graph, B, N, IN_FEATS)
    params = init_params(k_param, IN_FEATS, H_FEATS)

    ref = jax.block_until_ready(gcn_reference(adj_norm, x, params))

    # Default f32 path (bit-comparable tolerance).
    out = jax.block_until_ready(gcn_forward(adj_norm, x, params))
    assert out.shape == (B,)
    assert jnp.allclose(out, ref, atol=1e-4, rtol=1e-4), (out, ref)

    # bf16 MXU-operand path (v6e/v7x friendly): looser tolerance.
    out_bf16 = jax.block_until_ready(
        gcn_forward(adj_norm, x, params, compute_dtype=jnp.bfloat16))
    assert jnp.allclose(out_bf16, ref, atol=5e-2, rtol=5e-2), (out_bf16, ref)

    print("KERNEL_OK")
</pallas_src>

<mosaic_0001>
module attributes {stable_mosaic.version = 11 : i64} {
  func.func @gcn_kernel(%arg0: i32, %arg1: memref<8x16x16xf32, #tpu.memory_space<vmem>>, %arg2: memref<8x16x8xf32, #tpu.memory_space<vmem>>, %arg3: memref<8x32xf32, #tpu.memory_space<vmem>>, %arg4: memref<32x32xf32, #tpu.memory_space<vmem>>, %arg5: memref<4x32xf32, #tpu.memory_space<vmem>>, %arg6: memref<1x8xf32, #tpu.memory_space<vmem>>) attributes {dimension_semantics = [#tpu.dimension_semantics<parallel>], iteration_bounds = array<i64: 1>, scalar_prefetch = 0 : i64, scratch_operands = 0 : i64, tpu.core_type = #tpu.core_type<tc>, window_params = [{transform_indices = @transform_0, window_bounds = array<i64: 8, 16, 16>}, {transform_indices = @transform_1, window_bounds = array<i64: 8, 16, 8>}, {pipeline_mode = #tpu.pipeline_mode<synchronous>, transform_indices = @transform_2, window_bounds = array<i64: 8, 32>}, {pipeline_mode = #tpu.pipeline_mode<synchronous>, transform_indices = @transform_3, window_bounds = array<i64: 32, 32>}, {pipeline_mode = #tpu.pipeline_mode<synchronous>, transform_indices = @transform_4, window_bounds = array<i64: 4, 32>}, {transform_indices = @transform_5, window_bounds = array<i64: 1, 8>}]} {
    %c0 = arith.constant 0 : index
    %c0_0 = arith.constant 0 : index
    %0 = vector.load %arg5[%c0, %c0_0] : memref<4x32xf32, #tpu.memory_space<vmem>>, vector<1x32xf32>
    %c1 = arith.constant 1 : index
    %c0_1 = arith.constant 0 : index
    %1 = vector.load %arg5[%c1, %c0_1] : memref<4x32xf32, #tpu.memory_space<vmem>>, vector<1x32xf32>
    %c2 = arith.constant 2 : index
    %c0_2 = arith.constant 0 : index
    %2 = vector.load %arg5[%c2, %c0_2] : memref<4x32xf32, #tpu.memory_space<vmem>>, vector<1x32xf32>
    %c3 = arith.constant 3 : index
    %c0_3 = arith.constant 0 : index
    %3 = vector.load %arg5[%c3, %c0_3] : memref<4x32xf32, #tpu.memory_space<vmem>>, vector<1x1xf32>
    %c0_4 = arith.constant 0 : index
    %c0_5 = arith.constant 0 : index
    %c0_6 = arith.constant 0 : index
    %4 = vector.load %arg1[%c0_4, %c0_5, %c0_6] : memref<8x16x16xf32, #tpu.memory_space<vmem>>, vector<8x16x16xf32>
    %c0_7 = arith.constant 0 : index
    %c0_8 = arith.constant 0 : index
    %c0_9 = arith.constant 0 : index
    %5 = vector.load %arg2[%c0_7, %c0_8, %c0_9] : memref<8x16x8xf32, #tpu.memory_space<vmem>>, vector<8x16x8xf32>
    "tpu.trace_start"() <{level = 10 : i32, message = "gnm,gmf->gnf"}> : () -> ()
    %cst = arith.constant dense<0.000000e+00> : vector<8x16x8xf32>
    %6 = tpu.matmul %4, %5, %cst {dimension_numbers = #tpu.dot_dimension_numbers<[2], [1], [1], [2], [0, 0, 0, 1, 1, 2], [0], [0]>} : vector<8x16x16xf32>, vector<8x16x8xf32>, vector<8x16x8xf32> -> vector<8x16x8xf32>
    "tpu.trace_stop"() : () -> ()
    %7 = vector.shape_cast %6 : vector<8x16x8xf32> to vector<128x8xf32>
    %c0_10 = arith.constant 0 : index
    %c0_11 = arith.constant 0 : index
    %8 = vector.load %arg3[%c0_10, %c0_11] : memref<8x32xf32, #tpu.memory_space<vmem>>, vector<8x32xf32>
    %cst_12 = arith.constant dense<0.000000e+00> : vector<128x32xf32>
    %9 = tpu.matmul %7, %8, %cst_12 {dimension_numbers = #tpu.dot_dimension_numbers<[1], [0], [0], [1], [0, 0, 1, 1], [], []>} : vector<128x8xf32>, vector<8x32xf32>, vector<128x32xf32> -> vector<128x32xf32>
    %10 = vector.broadcast %0 : vector<1x32xf32> to vector<128x32xf32>
    %11 = arith.addf %9, %10 : vector<128x32xf32>
    %cst_13 = arith.constant 0.000000e+00 : f32
    %12 = vector.broadcast %cst_13 : f32 to vector<128x32xf32>
    %13 = arith.maximumf %11, %12 : vector<128x32xf32>
    %14 = vector.shape_cast %13 : vector<128x32xf32> to vector<8x16x32xf32>
    "tpu.trace_start"() <{level = 10 : i32, message = "gnm,gmh->gnh"}> : () -> ()
    %cst_14 = arith.constant dense<0.000000e+00> : vector<8x16x32xf32>
    %15 = tpu.matmul %4, %14, %cst_14 {dimension_numbers = #tpu.dot_dimension_numbers<[2], [1], [1], [2], [0, 0, 0, 1, 1, 2], [0], [0]>} : vector<8x16x16xf32>, vector<8x16x32xf32>, vector<8x16x32xf32> -> vector<8x16x32xf32>
    "tpu.trace_stop"() : () -> ()
    %16 = vector.shape_cast %15 : vector<8x16x32xf32> to vector<128x32xf32>
    %c0_15 = arith.constant 0 : index
    %c0_16 = arith.constant 0 : index
    %17 = vector.load %arg4[%c0_15, %c0_16] : memref<32x32xf32, #tpu.memory_space<vmem>>, vector<32x32xf32>
    %cst_17 = arith.constant dense<0.000000e+00> : vector<128x32xf32>
    %18 = tpu.matmul %16, %17, %cst_17 {dimension_numbers = #tpu.dot_dimension_numbers<[1], [0], [0], [1], [0, 0, 1, 1], [], []>} : vector<128x32xf32>, vector<32x32xf32>, vector<128x32xf32> -> vector<128x32xf32>
    %19 = vector.broadcast %1 : vector<1x32xf32> to vector<128x32xf32>
    %20 = arith.addf %18, %19 : vector<128x32xf32>
    %cst_18 = arith.constant 0.000000e+00 : f32
    %21 = vector.broadcast %cst_18 : f32 to vector<128x32xf32>
    %22 = arith.maximumf %20, %21 : vector<128x32xf32>
    %23 = vector.shape_cast %22 : vector<128x32xf32> to vector<8x16x32xf32>
    %cst_19 = arith.constant dense<0.000000e+00> : vector<8x32xf32>
    %24 = vector.multi_reduction <add>, %23, %cst_19 [1] : vector<8x16x32xf32> to vector<8x32xf32>
    %cst_20 = arith.constant 1.600000e+01 : f32
    %25 = vector.broadcast %cst_20 : f32 to vector<8x32xf32>
    %26 = arith.divf %24, %25 : vector<8x32xf32>
    "tpu.trace_start"() <{level = 10 : i32, message = "ah,gh->ag"}> : () -> ()
    %cst_21 = arith.constant dense<0.000000e+00> : vector<1x8xf32>
    %27 = tpu.matmul %2, %26, %cst_21 {dimension_numbers = #tpu.dot_dimension_numbers<[1], [1], [0], [0], [0, 0, 1, 0], [], []>} : vector<1x32xf32>, vector<8x32xf32>, vector<1x8xf32> -> vector<1x8xf32>
    "tpu.trace_stop"() : () -> ()
    %28 = vector.broadcast %3 : vector<1x1xf32> to vector<1x8xf32>
    %29 = arith.addf %27, %28 : vector<1x8xf32>
    %c0_22 = arith.constant 0 : index
    %c0_23 = arith.constant 0 : index
    %30 = vector.load %arg6[%c0_22, %c0_23] : memref<1x8xf32, #tpu.memory_space<vmem>>, vector<1x8xf32>
    tpu.vector_store %arg6[%c0_22, %c0_23], %29 {strides = array<i32>} : memref<1x8xf32, #tpu.memory_space<vmem>>, vector<1x8xf32>,
    return
  }
  func.func @transform_0(%arg0: i32) -> (i32, i32, i32) {
    %c0_i32 = arith.constant 0 : i32
    %c0_i32_0 = arith.constant 0 : i32
    %c0_i32_1 = arith.constant 0 : i32
    return %arg0, %c0_i32, %c0_i32_0 : i32, i32, i32
  }
  func.func @transform_1(%arg0: i32) -> (i32, i32, i32) {
    %c0_i32 = arith.constant 0 : i32
    %c0_i32_0 = arith.constant 0 : i32
    %c0_i32_1 = arith.constant 0 : i32
    return %arg0, %c0_i32, %c0_i32_0 : i32, i32, i32
  }
  func.func @transform_2(%arg0: i32) -> (i32, i32) {
    %c0_i32 = arith.constant 0 : i32
    %c0_i32_0 = arith.constant 0 : i32
    %c0_i32_1 = arith.constant 0 : i32
    return %c0_i32, %c0_i32_0 : i32, i32
  }
  func.func @transform_3(%arg0: i32) -> (i32, i32) {
    %c0_i32 = arith.constant 0 : i32
    %c0_i32_0 = arith.constant 0 : i32
    %c0_i32_1 = arith.constant 0 : i32
    return %c0_i32, %c0_i32_0 : i32, i32
  }
  func.func @transform_4(%arg0: i32) -> (i32, i32) {
    %c0_i32 = arith.constant 0 : i32
    %c0_i32_0 = arith.constant 0 : i32
    %c0_i32_1 = arith.constant 0 : i32
    return %c0_i32, %c0_i32_0 : i32, i32
  }
  func.func @transform_5(%arg0: i32) -> (i32, i32) {
    %c0_i32 = arith.constant 0 : i32
    %c0_i32_0 = arith.constant 0 : i32
    return %arg0, %c0_i32 : i32, i32
  }
}

</mosaic_0001>

<llo_original>
// kernel: tpu_custom_call.1
$region0: #{tpu_custom_call.1}
  #allocation0 [shape = 'u32[]', space=smem, size = 0x4, offset = 0x4, fixed_abs, tag = 'smem constant byte address 0x4 - core index']
  #allocation1 [shape = 'u32[144,128]{1,0:T(1,128)}', space=vmem, size = 0x12000, scoped, tag = 'internal scratch']
  %s0 = inlined_call_operand.vmem [shape: f32[8,16,16], index: 0, kind: input, shape index: {}]
  %s1 = inlined_call_operand.vmem [shape: f32[8,16,8], index: 1, kind: input, shape index: {}]
  %s2 = inlined_call_operand.vmem [shape: f32[8,32], index: 2, kind: input, shape index: {}]
  %s3 = inlined_call_operand.vmem [shape: f32[32,32], index: 3, kind: input, shape index: {}]
  %s4 = inlined_call_operand.vmem [shape: f32[4,32], index: 4, kind: input, shape index: {}]
  %s5 = inlined_call_operand.hbm [shape: f32[1,8], index: 5, kind: output, shape index: {}]
  %s6 = sld [smem:[#allocation0]]
  $region30: #{tpu_custom_call.1} parent=0
    _
  %s8 = ssub.s32 1, %s6
  %s9 = scalar_select 0, %s8, %s6
  $region1: #{tpu_custom_call.1} parent=0
    #allocation2 [shape = 'u8[512]{0}', space=vmem, size = 0x400, scoped, tag = 'output window, operand 0, single buffered']
    #allocation3 [shape = 's32[1]{0}', space=sflag, size = 0x4, scoped, tag = 'scoped memory for tpu_custom_call.1']
    %10 = vsyncpa [#allocation3], 0
    // Predicated region
    $region2: #{tpu_custom_call.1} parent=1 // pred_check
      _
    $region3: #{tpu_custom_call.1} parent=1 // pred_check_branch
      %12 = sbr.rel (0) target = $region5
    $region4: #{tpu_custom_call.1} parent=1 // pred_region
      _
    $region5: #{tpu_custom_call.1} parent=1 // pred_fallthru
      _
    // Predicated region
    $region6: #{tpu_custom_call.1} parent=1 // pred_check
      _
    $region7: #{tpu_custom_call.1} parent=1 // pred_check_branch
      %14 = sbr.rel (0) target = $region9
    $region8: #{tpu_custom_call.1} parent=1 // pred_region
      _
    $region9: #{tpu_custom_call.1} parent=1 // pred_fallthru
      _
    // Predicated region
    $region10: #{tpu_custom_call.1} parent=1 // pred_check
      _
    $region11: #{tpu_custom_call.1} parent=1 // pred_check_branch
      %16 = sbr.rel (0) target = $region13
    $region12: #{tpu_custom_call.1} parent=1 // pred_region
      _
    $region13: #{tpu_custom_call.1} parent=1 // pred_fallthru
      _
    // Predicated region
    $region14: #{tpu_custom_call.1} parent=1 // pred_check
      _
    $region15: #{tpu_custom_call.1} parent=1 // pred_check_branch
      %18 = sbr.rel (0) target = $region17
    $region16: #{tpu_custom_call.1} parent=1 // pred_region
      _
    $region17: #{tpu_custom_call.1} parent=1 // pred_fallthru
      _
    // Predicated region
    $region18: #{tpu_custom_call.1} parent=1 // pred_check
      _
    $region19: #{tpu_custom_call.1} parent=1 // pred_check_branch
      %20 = sbr.rel (0) target = $region21
    $region20: #{tpu_custom_call.1} parent=1 // pred_region
      _
    $region21: #{tpu_custom_call.1} parent=1 // pred_fallthru
      _
    %v21 = vld [vmem:[%s4] sm:$0x1]
    %v22 = vld [vmem:[%s4 + $0x1] sm:$0x1]
    %v23 = vld [vmem:[%s4 + $0x2] sm:$0x1]
    %v24 = vld [vmem:[%s4 + $0x3] sm:$0x1]
    %v25 = vld [vmem:[%s0] sm:$0xff]
    %v26 = vld [vmem:[%s0 + $0x8] sm:$0xff]
    %v27 = vld [vmem:[%s0 + $0x10] sm:$0xff]
    %v28 = vld [vmem:[%s0 + $0x18] sm:$0xff]
    %v29 = vld [vmem:[%s0 + $0x20] sm:$0xff]
    %v30 = vld [vmem:[%s0 + $0x28] sm:$0xff]
    %v31 = vld [vmem:[%s0 + $0x30] sm:$0xff]
    %v32 = vld [vmem:[%s0 + $0x38] sm:$0xff]
    %v33 = vld [vmem:[%s0 + $0x40] sm:$0xff]
    %v34 = vld [vmem:[%s0 + $0x48] sm:$0xff]
    %v35 = vld [vmem:[%s0 + $0x50] sm:$0xff]
    %v36 = vld [vmem:[%s0 + $0x58] sm:$0xff]
    %v37 = vld [vmem:[%s0 + $0x60] sm:$0xff]
    %v38 = vld [vmem:[%s0 + $0x68] sm:$0xff]
    %v39 = vld [vmem:[%s0 + $0x70] sm:$0xff]
    %v40 = vld [vmem:[%s0 + $0x78] sm:$0xff]
    %v41 = vld [vmem:[%s1] sm:$0xff]
    %v42 = vld [vmem:[%s1 + $0x8] sm:$0xff]
    %v43 = vld [vmem:[%s1 + $0x10] sm:$0xff]
    %v44 = vld [vmem:[%s1 + $0x18] sm:$0xff]
    %v45 = vld [vmem:[%s1 + $0x20] sm:$0xff]
    %v46 = vld [vmem:[%s1 + $0x28] sm:$0xff]
    %v47 = vld [vmem:[%s1 + $0x30] sm:$0xff]
    %v48 = vld [vmem:[%s1 + $0x38] sm:$0xff]
    %v49 = vld [vmem:[%s1 + $0x40] sm:$0xff]
    %v50 = vld [vmem:[%s1 + $0x48] sm:$0xff]
    %v51 = vld [vmem:[%s1 + $0x50] sm:$0xff]
    %v52 = vld [vmem:[%s1 + $0x58] sm:$0xff]
    %v53 = vld [vmem:[%s1 + $0x60] sm:$0xff]
    %v54 = vld [vmem:[%s1 + $0x68] sm:$0xff]
    %v55 = vld [vmem:[%s1 + $0x70] sm:$0xff]
    %v56 = vld [vmem:[%s1 + $0x78] sm:$0xff]
    %vm57 = vcmask 130048
    %v59 = vsel %vm57, %v25, 0
    %v62 = vsel %vm57, %v26, 0
    %64 = vmatprep.subr.mxu0 0.0
    %65 = vmatpush1.msra.mxu0 %v41
    %66 = vmatprep.subr.mxu0 0.0
    %67 = vmatpush1.msra.mxu0 %v42
    %68 = vmatprep.subr.mxu0 0.0
    %69 = vmatpush1.msra.mxu0 0.0
    %70 = vmatprep.subr.mxu0 0.0
    %71 = vmatpush1.msra.mxu0 0.0
    %72 = vmatprep.subr.mxu0 0.0
    %73 = vmatpush1.msra.mxu0 0.0
    %74 = vmatprep.subr.mxu0 0.0
    %75 = vmatpush1.msra.mxu0 0.0
    %76 = vmatprep.subr.mxu0 0.0
    %77 = vmatpush1.msra.mxu0 0.0
    %78 = vmatprep.subr.mxu0 0.0
    %79 = vmatpush1.msra.mxu0 0.0
    %80 = vmatprep.subr.mxu0 0.0
    %81 = vmatpush1.msra.mxu0 0.0
    %82 = vmatprep.subr.mxu0 0.0
    %83 = vmatpush1.msra.mxu0 0.0
    %84 = vmatprep.subr.mxu0 0.0
    %85 = vmatpush1.msra.mxu0 0.0
    %86 = vmatprep.subr.mxu0 0.0
    %87 = vmatpush1.msra.mxu0 0.0
    %88 = vmatprep.subr.mxu0 0.0
    %89 = vmatpush1.msra.mxu0 0.0
    %90 = vmatprep.subr.mxu0 0.0
    %91 = vmatpush1.msra.mxu0 0.0
    %92 = vmatprep.subr.mxu0 0.0
    %93 = vmatpush1.msra.mxu0 0.0
    %94 = vmatprep.subr.mxu0 0.0
    %95 = vmatpush1.msra.mxu0 0.0
    %96 = vmatprep.subr.mxu0 0.0
    %97 = vmatpush1.msra.mxu0 0.0
    %98 = vmatprep.subr.mxu0 0.0
    %99 = vmatpush1.msra.mxu0 0.0
    %100 = vmatprep.subr.mxu0 0.0
    %101 = vmatpush1.msra.mxu0 0.0
    %102 = vmatprep.subr.mxu0 0.0
    %103 = vmatpush1.msra.mxu0 0.0
    %104 = vmatprep.subr.mxu0 0.0
    %105 = vmatpush1.msra.mxu0 0.0
    %106 = vmatprep.subr.mxu0 0.0
    %107 = vmatpush1.msra.mxu0 0.0
    %108 = vmatprep.subr.mxu0 0.0
    %109 = vmatpush1.msra.mxu0 0.0
    %110 = vmatprep.subr.mxu0 0.0
    %111 = vmatpush1.msra.mxu0 0.0
    %112 = vmatprep.subr.mxu0 0.0
    %113 = vmatpush1.msra.mxu0 0.0
    %114 = vmatprep.subr.mxu0 0.0
    %115 = vmatpush1.msra.mxu0 0.0
    %116 = vmatprep.subr.mxu0 0.0
    %117 = vmatpush1.msra.mxu0 0.0
    %118 = vmatprep.subr.mxu0 0.0
    %119 = vmatpush1.msra.mxu0 0.0
    %120 = vmatprep.subr.mxu0 0.0
    %121 = vmatpush1.msra.mxu0 0.0
    %122 = vmatprep.subr.mxu0 0.0
    %123 = vmatpush1.msra.mxu0 0.0
    %124 = vmatprep.subr.mxu0 0.0
    %125 = vmatpush1.msra.mxu0 0.0
    %126 = vmatprep.subr.mxu0 0.0
    %127 = vmatpush1.msra.mxu0 0.0
    %128 = vmatprep.mubr.f32.mxu0 0.0
    %129 = vmatmul.mubr.f32.gmra.mrb[0].mxu0 %v59
    %v130 = vpop.f32.mrb[0].mxu0
    %v131 = vadd.f32 0.0, %v130
    %v132 = vpop.f32.mrb[0].mxu0
    %133 = vmatprep.mubr.f32.mxu0 0.0
    %134 = vmatmul.mubr.f32.gmra.mrb[0].mxu0 %v62
    %v135 = vpop.f32.mrb[0].mxu0
    %v136 = vadd.f32 0.0, %v135
    %v137 = vpop.f32.mrb[0].mxu0
    %138 = vdwg.mxu0
    %v140 = vsel %vm57, %v27, 0
    %v143 = vsel %vm57, %v28, 0
    %145 = vmatprep.subr.mxu0 0.0
    %146 = vmatpush1.msra.mxu0 %v43
    %147 = vmatprep.subr.mxu0 0.0
    %148 = vmatpush1.msra.mxu0 %v44
    %149 = vmatprep.subr.mxu0 0.0
    %150 = vmatpush1.msra.mxu0 0.0
    %151 = vmatprep.subr.mxu0 0.0
    %152 = vmatpush1.msra.mxu0 0.0
    %153 = vmatprep.subr.mxu0 0.0
    %154 = vmatpush1.msra.mxu0 0.0
    %155 = vmatprep.subr.mxu0 0.0
    %156 = vmatpush1.msra.mxu0 0.0
    %157 = vmatprep.subr.mxu0 0.0
    %158 = vmatpush1.msra.mxu0 0.0
    %159 = vmatprep.subr.mxu0 0.0
    %160 = vmatpush1.msra.mxu0 0.0
    %161 = vmatprep.subr.mxu0 0.0
    %162 = vmatpush1.msra.mxu0 0.0
    %163 = vmatprep.subr.mxu0 0.0
    %164 = vmatpush1.msra.mxu0 0.0
    %165 = vmatprep.subr.mxu0 0.0
    %166 = vmatpush1.msra.mxu0 0.0
    %167 = vmatprep.subr.mxu0 0.0
    %168 = vmatpush1.msra.mxu0 0.0
    %169 = vmatprep.subr.mxu0 0.0
    %170 = vmatpush1.msra.mxu0 0.0
    %171 = vmatprep.subr.mxu0 0.0
    %172 = vmatpush1.msra.mxu0 0.0
    %173 = vmatprep.subr.mxu0 0.0
    %174 = vmatpush1.msra.mxu0 0.0
    %175 = vmatprep.subr.mxu0 0.0
    %176 = vmatpush1.msra.mxu0 0.0
    %177 = vmatprep.subr.mxu0 0.0
    %178 = vmatpush1.msra.mxu0 0.0
    %179 = vmatprep.subr.mxu0 0.0
    %180 = vmatpush1.msra.mxu0 0.0
    %181 = vmatprep.subr.mxu0 0.0
    %182 = vmatpush1.msra.mxu0 0.0
    %183 = vmatprep.subr.mxu0 0.0
    %184 = vmatpush1.msra.mxu0 0.0
    %185 = vmatprep.subr.mxu0 0.0
    %186 = vmatpush1.msra.mxu0 0.0
    %187 = vmatprep.subr.mxu0 0.0
    %188 = vmatpush1.msra.mxu0 0.0
    %189 = vmatprep.subr.mxu0 0.0
    %190 = vmatpush1.msra.mxu0 0.0
    %191 = vmatprep.subr.mxu0 0.0
    %192 = vmatpush1.msra.mxu0 0.0
    %193 = vmatprep.subr.mxu0 0.0
    %194 = vmatpush1.msra.mxu0 0.0
    %195 = vmatprep.subr.mxu0 0.0
    %196 = vmatpush1.msra.mxu0 0.0
    %197 = vmatprep.subr.mxu0 0.0
    %198 = vmatpush1.msra.mxu0 0.0
    %199 = vmatprep.subr.mxu0 0.0
    %200 = vmatpush1.msra.mxu0 0.0
    %201 = vmatprep.subr.mxu0 0.0
    %202 = vmatpush1.msra.mxu0 0.0
    %203 = vmatprep.subr.mxu0 0.0
    %204 = vmatpush1.msra.mxu0 0.0
    %205 = vmatprep.subr.mxu0 0.0
    %206 = vmatpush1.msra.mxu0 0.0
    %207 = vmatprep.subr.mxu0 0.0
    %208 = vmatpush1.msra.mxu0 0.0
    %209 = vmatprep.mubr.f32.mxu0 0.0
    %210 = vmatmul.mubr.f32.gmra.mrb[0].mxu0 %v140
    %v211 = vpop.f32.mrb[0].mxu0
    %v212 = vadd.f32 0.0, %v211
    %v213 = vpop.f32.mrb[0].mxu0
    %214 = vmatprep.mubr.f32.mxu0 0.0
    %215 = vmatmul.mubr.f32.gmra.mrb[0].mxu0 %v143
    %v216 = vpop.f32.mrb[0].mxu0
    %v217 = vadd.f32 0.0, %v216
    %v218 = vpop.f32.mrb[0].mxu0
    %219 = vdwg.mxu0
    %v221 = vsel %vm57, %v29, 0
    %v224 = vsel %vm57, %v30, 0
    %226 = vmatprep.subr.mxu0 0.0
    %227 = vmatpush1.msra.mxu0 %v45
    %228 = vmatprep.subr.mxu0 0.0
    %229 = vmatpush1.msra.mxu0 %v46
    %230 = vmatprep.subr.mxu0 0.0
    %231 = vmatpush1.msra.mxu0 0.0
    %232 = vmatprep.subr.mxu0 0.0
    %233 = vmatpush1.msra.mxu0 0.0
    %234 = vmatprep.subr.mxu0 0.0
    %235 = vmatpush1.msra.mxu0 0.0
    %236 = vmatprep.subr.mxu0 0.0
    %237 = vmatpush1.msra.mxu0 0.0
    %238 = vmatprep.subr.mxu0 0.0
    %239 = vmatpush1.msra.mxu0 0.0
    %240 = vmatprep.subr.mxu0 0.0
    %241 = vmatpush1.msra.mxu0 0.0
    %242 = vmatprep.subr.mxu0 0.0
    %243 = vmatpush1.msra.mxu0 0.0
    %244 = vmatprep.subr.mxu0 0.0
    %245 = vmatpush1.msra.mxu0 0.0
    %246 = vmatprep.subr.mxu0 0.0
    %247 = vmatpush1.msra.mxu0 0.0
    %248 = vmatprep.subr.mxu0 0.0
    %249 = vmatpush1.msra.mxu0 0.0
    %250 = vmatprep.subr.mxu0 0.0
    %251 = vmatpush1.msra.mxu0 0.0
    %252 = vmatprep.subr.mxu0 0.0
    %253 = vmatpush1.msra.mxu0 0.0
    %254 = vmatprep.subr.mxu0 0.0
    %255 = vmatpush1.msra.mxu0 0.0
    %256 = vmatprep.subr.mxu0 0.0
    %257 = vmatpush1.msra.mxu0 0.0
    %258 = vmatprep.subr.mxu0 0.0
    %259 = vmatpush1.msra.mxu0 0.0
    %260 = vmatprep.subr.mxu0 0.0
    %261 = vmatpush1.msra.mxu0 0.0
    %262 = vmatprep.subr.mxu0 0.0
    %263 = vmatpush1.msra.mxu0 0.0
    %264 = vmatprep.subr.mxu0 0.0
    %265 = vmatpush1.msra.mxu0 0.0
    %266 = vmatprep.subr.mxu0 0.0
    %267 = vmatpush1.msra.mxu0 0.0
    %268 = vmatprep.subr.mxu0 0.0
    %269 = vmatpush1.msra.mxu0 0.0
    %270 = vmatprep.subr.mxu0 0.0
    %271 = vmatpush1.msra.mxu0 0.0
    %272 = vmatprep.subr.mxu0 0.0
    %273 = vmatpush1.msra.mxu0 0.0
    %274 = vmatprep.subr.mxu0 0.0
    %275 = vmatpush1.msra.mxu0 0.0
    %276 = vmatprep.subr.mxu0 0.0
    %277 = vmatpush1.msra.mxu0 0.0
    %278 = vmatprep.subr.mxu0 0.0
    %279 = vmatpush1.msra.mxu0 0.0
    %280 = vmatprep.subr.mxu0 0.0
    %281 = vmatpush1.msra.mxu0 0.0
    %282 = vmatprep.subr.mxu0 0.0
    %283 = vmatpush1.msra.mxu0 0.0
    %284 = vmatprep.subr.mxu0 0.0
    %285 = vmatpush1.msra.mxu0 0.0
    %286 = vmatprep.subr.mxu0 0.0
    %287 = vmatpush1.msra.mxu0 0.0
    %288 = vmatprep.subr.mxu0 0.0
    %289 = vmatpush1.msra.mxu0 0.0
    %290 = vmatprep.mubr.f32.mxu0 0.0
    %291 = vmatmul.mubr.f32.gmra.mrb[0].mxu0 %v221
    %v292 = vpop.f32.mrb[0].mxu0
    %v293 = vadd.f32 0.0, %v292
    %v294 = vpop.f32.mrb[0].mxu0
    %295 = vmatprep.mubr.f32.mxu0 0.0
    %296 = vmatmul.mubr.f32.gmra.mrb[0].mxu0 %v224
    %v297 = vpop.f32.mrb[0].mxu0
    %v298 = vadd.f32 0.0, %v297
    %v299 = vpop.f32.mrb[0].mxu0
    %300 = vdwg.mxu0
    %v302 = vsel %vm57, %v31, 0
    %v305 = vsel %vm57, %v32, 0
    %307 = vmatprep.subr.mxu0 0.0
    %308 = vmatpush1.msra.mxu0 %v47
    %309 = vmatprep.subr.mxu0 0.0
    %310 = vmatpush1.msra.mxu0 %v48
    %311 = vmatprep.subr.mxu0 0.0
    %312 = vmatpush1.msra.mxu0 0.0
    %313 = vmatprep.subr.mxu0 0.0
    %314 = vmatpush1.msra.mxu0 0.0
    %315 = vmatprep.subr.mxu0 0.0
    %316 = vmatpush1.msra.mxu0 0.0
    %317 = vmatprep.subr.mxu0 0.0
    %318 = vmatpush1.msra.mxu0 0.0
    %319 = vmatprep.subr.mxu0 0.0
    %320 = vmatpush1.msra.mxu0 0.0
    %321 = vmatprep.subr.mxu0 0.0
    %322 = vmatpush1.msra.mxu0 0.0
    %323 = vmatprep.subr.mxu0 0.0
    %324 = vmatpush1.msra.mxu0 0.0
    %325 = vmatprep.subr.mxu0 0.0
    %326 = vmatpush1.msra.mxu0 0.0
    %327 = vmatprep.subr.mxu0 0.0
    %328 = vmatpush1.msra.mxu0 0.0
    %329 = vmatprep.subr.mxu0 0.0
    %330 = vmatpush1.msra.mxu0 0.0
    %331 = vmatprep.subr.mxu0 0.0
    %332 = vmatpush1.msra.mxu0 0.0
    %333 = vmatprep.subr.mxu0 0.0
    %334 = vmatpush1.msra.mxu0 0.0
    %335 = vmatprep.subr.mxu0 0.0
    %336 = vmatpush1.msra.mxu0 0.0
    %337 = vmatprep.subr.mxu0 0.0
    %338 = vmatpush1.msra.mxu0 0.0
    %339 = vmatprep.subr.mxu0 0.0
    %340 = vmatpush1.msra.mxu0 0.0
    %341 = vmatprep.subr.mxu0 0.0
    %342 = vmatpush1.msra.mxu0 0.0
    %343 = vmatprep.subr.mxu0 0.0
    %344 = vmatpush1.msra.mxu0 0.0
    %345 = vmatprep.subr.mxu0 0.0
    %346 = vmatpush1.msra.mxu0 0.0
    %347 = vmatprep.subr.mxu0 0.0
    %348 = vmatpush1.msra.mxu0 0.0
    %349 = vmatprep.subr.mxu0 0.0
    %350 = vmatpush1.msra.mxu0 0.0
    %351 = vmatprep.subr.mxu0 0.0
    %352 = vmatpush1.msra.mxu0 0.0
    %353 = vmatprep.subr.mxu0 0.0
    %354 = vmatpush1.msra.mxu0 0.0
    %355 = vmatprep.subr.mxu0 0.0
    %356 = vmatpush1.msra.mxu0 0.0
    %357 = vmatprep.subr.mxu0 0.0
    %358 = vmatpush1.msra.mxu0 0.0
    %359 = vmatprep.subr.mxu0 0.0
    %360 = vmatpush1.msra.mxu0 0.0
    %361 = vmatprep.subr.mxu0 0.0
    %362 = vmatpush1.msra.mxu0 0.0
    %363 = vmatprep.subr.mxu0 0.0
    %364 = vmatpush1.msra.mxu0 0.0
    %365 = vmatprep.subr.mxu0 0.0
    %366 = vmatpush1.msra.mxu0 0.0
    %367 = vmatprep.subr.mxu0 0.0
    %368 = vmatpush1.msra.mxu0 0.0
    %369 = vmatprep.subr.mxu0 0.0
    %370 = vmatpush1.msra.mxu0 0.0
    %371 = vmatprep.mubr.f32.mxu0 0.0
    %372 = vmatmul.mubr.f32.gmra.mrb[0].mxu0 %v302
    %v373 = vpop.f32.mrb[0].mxu0
    %v374 = vadd.f32 0.0, %v373
    %v375 = vpop.f32.mrb[0].mxu0
    %376 = vmatprep.mubr.f32.mxu0 0.0
    %377 = vmatmul.mubr.f32.gmra.mrb[0].mxu0 %v305
    %v378 = vpop.f32.mrb[0].mxu0
    %v379 = vadd.f32 0.0, %v378
    %v380 = vpop.f32.mrb[0].mxu0
    %381 = vdwg.mxu0
    %v383 = vsel %vm57, %v33, 0
    %v386 = vsel %vm57, %v34, 0
    %388 = vmatprep.subr.mxu0 0.0
    %389 = vmatpush1.msra.mxu0 %v49
    %390 = vmatprep.subr.mxu0 0.0
    %391 = vmatpush1.msra.mxu0 %v50
    %392 = vmatprep.subr.mxu0 0.0
    %393 = vmatpush1.msra.mxu0 0.0
    %394 = vmatprep.subr.mxu0 0.0
    %395 = vmatpush1.msra.mxu0 0.0
    %396 = vmatprep.subr.mxu0 0.0
    %397 = vmatpush1.msra.mxu0 0.0
    %398 = vmatprep.subr.mxu0 0.0
    %399 = vmatpush1.msra.mxu0 0.0
    %400 = vmatprep.subr.mxu0 0.0
    %401 = vmatpush1.msra.mxu0 0.0
    %402 = vmatprep.subr.mxu0 0.0
    %403 = vmatpush1.msra.mxu0 0.0
    %404 = vmatprep.subr.mxu0 0.0
    %405 = vmatpush1.msra.mxu0 0.0
    %406 = vmatprep.subr.mxu0 0.0
    %407 = vmatpush1.msra.mxu0 0.0
    %408 = vmatprep.subr.mxu0 0.0
    %409 = vmatpush1.msra.mxu0 0.0
    %410 = vmatprep.subr.mxu0 0.0
    %411 = vmatpush1.msra.mxu0 0.0
    %412 = vmatprep.subr.mxu0 0.0
    %413 = vmatpush1.msra.mxu0 0.0
    %414 = vmatprep.subr.mxu0 0.0
    %415 = vmatpush1.msra.mxu0 0.0
    %416 = vmatprep.subr.mxu0 0.0
    %417 = vmatpush1.msra.mxu0 0.0
    %418 = vmatprep.subr.mxu0 0.0
    %419 = vmatpush1.msra.mxu0 0.0
    %420 = vmatprep.subr.mxu0 0.0
    %421 = vmatpush1.msra.mxu0 0.0
    %422 = vmatprep.subr.mxu0 0.0
    %423 = vmatpush1.msra.mxu0 0.0
    %424 = vmatprep.subr.mxu0 0.0
    %425 = vmatpush1.msra.mxu0 0.0
    %426 = vmatprep.subr.mxu0 0.0
    %427 = vmatpush1.msra.mxu0 0.0
    %428 = vmatprep.subr.mxu0 0.0
    %429 = vmatpush1.msra.mxu0 0.0
    %430 = vmatprep.subr.mxu0 0.0
    %431 = vmatpush1.msra.mxu0 0.0
    %432 = vmatprep.subr.mxu0 0.0
    %433 = vmatpush1.msra.mxu0 0.0
    %434 = vmatprep.subr.mxu0 0.0
    %435 = vmatpush1.msra.mxu0 0.0
    %436 = vmatprep.subr.mxu0 0.0
    %437 = vmatpush1.msra.mxu0 0.0
    %438 = vmatprep.subr.mxu0 0.0
    %439 = vmatpush1.msra.mxu0 0.0
    %440 = vmatprep.subr.mxu0 0.0
    %441 = vmatpush1.msra.mxu0 0.0
    %442 = vmatprep.subr.mxu0 0.0
    %443 = vmatpush1.msra.mxu0 0.0
    %444 = vmatprep.subr.mxu0 0.0
    %445 = vmatpush1.msra.mxu0 0.0
    %446 = vmatprep.subr.mxu0 0.0
    %447 = vmatpush1.msra.mxu0 0.0
    %448 = vmatprep.subr.mxu0 0.0
    %449 = vmatpush1.msra.mxu0 0.0
    %450 = vmatprep.subr.mxu0 0.0
    %451 = vmatpush1.msra.mxu0 0.0
    %452 = vmatprep.mubr.f32.mxu0 0.0
    %453 = vmatmul.mubr.f32.gmra.mrb[0].mxu0 %v383
    %v454 = vpop.f32.mrb[0].mxu0
    %v455 = vadd.f32 0.0, %v454
    %v456 = vpop.f32.mrb[0].mxu0
    %457 = vmatprep.mubr.f32.mxu0 0.0
    %458 = vmatmul.mubr.f32.gmra.mrb[0].mxu0 %v386
    %v459 = vpop.f32.mrb[0].mxu0
    %v460 = vadd.f32 0.0, %v459
    %v461 = vpop.f32.mrb[0].mxu0
    %462 = vdwg.mxu0
    %v464 = vsel %vm57, %v35, 0
    %v467 = vsel %vm57, %v36, 0
    %469 = vmatprep.subr.mxu0 0.0
    %470 = vmatpush1.msra.mxu0 %v51
    %471 = vmatprep.subr.mxu0 0.0
    %472 = vmatpush1.msra.mxu0 %v52
    %473 = vmatprep.subr.mxu0 0.0
    %474 = vmatpush1.msra.mxu0 0.0
    %475 = vmatprep.subr.mxu0 0.0
    %476 = vmatpush1.msra.mxu0 0.0
    %477 = vmatprep.subr.mxu0 0.0
    %478 = vmatpush1.msra.mxu0 0.0
    %479 = vmatprep.subr.mxu0 0.0
    %480 = vmatpush1.msra.mxu0 0.0
    %481 = vmatprep.subr.mxu0 0.0
    %482 = vmatpush1.msra.mxu0 0.0
    %483 = vmatprep.subr.mxu0 0.0
    %484 = vmatpush1.msra.mxu0 0.0
    %485 = vmatprep.subr.mxu0 0.0
    %486 = vmatpush1.msra.mxu0 0.0
    %487 = vmatprep.subr.mxu0 0.0
    %488 = vmatpush1.msra.mxu0 0.0
    %489 = vmatprep.subr.mxu0 0.0
    %490 = vmatpush1.msra.mxu0 0.0
    %491 = vmatprep.subr.mxu0 0.0
    %492 = vmatpush1.msra.mxu0 0.0
    %493 = vmatprep.subr.mxu0 0.0
    %494 = vmatpush1.msra.mxu0 0.0
    %495 = vmatprep.subr.mxu0 0.0
    %496 = vmatpush1.msra.mxu0 0.0
    %497 = vmatprep.subr.mxu0 0.0
    %498 = vmatpush1.msra.mxu0 0.0
    %499 = vmatprep.subr.mxu0 0.0
    %500 = vmatpush1.msra.mxu0 0.0
    %501 = vmatprep.subr.mxu0 0.0
    %502 = vmatpush1.msra.mxu0 0.0
    %503 = vmatprep.subr.mxu0 0.0
    %504 = vmatpush1.msra.mxu0 0.0
    %505 = vmatprep.subr.mxu0 0.0
    %506 = vmatpush1.msra.mxu0 0.0
    %507 = vmatprep.subr.mxu0 0.0
    %508 = vmatpush1.msra.mxu0 0.0
    %509 = vmatprep.subr.mxu0 0.0
    %510 = vmatpush1.msra.mxu0 0.0
    %511 = vmatprep.subr.mxu0 0.0
    %512 = vmatpush1.msra.mxu0 0.0
    %513 = vmatprep.subr.mxu0 0.0
    %514 = vmatpush1.msra.mxu0 0.0
    %515 = vmatprep.subr.mxu0 0.0
    %516 = vmatpush1.msra.mxu0 0.0
    %517 = vmatprep.subr.mxu0 0.0
    %518 = vmatpush1.msra.mxu0 0.0
    %519 = vmatprep.subr.mxu0 0.0
    %520 = vmatpush1.msra.mxu0 0.0
    %521 = vmatprep.subr.mxu0 0.0
    %522 = vmatpush1.msra.mxu0 0.0
    %523 = vmatprep.subr.mxu0 0.0
    %524 = vmatpush1.msra.mxu0 0.0
    %525 = vmatprep.subr.mxu0 0.0
    %526 = vmatpush1.msra.mxu0 0.0
    %527 = vmatprep.subr.mxu0 0.0
    %528 = vmatpush1.msra.mxu0 0.0
    %529 = vmatprep.subr.mxu0 0.0
    %530 = vmatpush1.msra.mxu0 0.0
    %531 = vmatprep.subr.mxu0 0.0
    %532 = vmatpush1.msra.mxu0 0.0
    %533 = vmatprep.mubr.f32.mxu0 0.0
    %534 = vmatmul.mubr.f32.gmra.mrb[0].mxu0 %v464
    %v535 = vpop.f32.mrb[0].mxu0
    %v536 = vadd.f32 0.0, %v535
    %v537 = vpop.f32.mrb[0].mxu0
    %538 = vmatprep.mubr.f32.mxu0 0.0
    %539 = vmatmul.mubr.f32.gmra.mrb[0].mxu0 %v467
    %v540 = vpop.f32.mrb[0].mxu0
    %v541 = vadd.f32 0.0, %v540
    %v542 = vpop.f32.mrb[0].mxu0
    %543 = vdwg.mxu0
    %v545 = vsel %vm57, %v37, 0
    %v548 = vsel %vm57, %v38, 0
    %550 = vmatprep.subr.mxu0 0.0
    %551 = vmatpush1.msra.mxu0 %v53
    %552 = vmatprep.subr.mxu0 0.0
    %553 = vmatpush1.msra.mxu0 %v54
    %554 = vmatprep.subr.mxu0 0.0
    %555 = vmatpush1.msra.mxu0 0.0
    %556 = vmatprep.subr.mxu0 0.0
    %557 = vmatpush1.msra.mxu0 0.0
    %558 = vmatprep.subr.mxu0 0.0
    %559 = vmatpush1.msra.mxu0 0.0
    %560 = vmatprep.subr.mxu0 0.0
    %561 = vmatpush1.msra.mxu0 0.0
    %562 = vmatprep.subr.mxu0 0.0
    %563 = vmatpush1.msra.mxu0 0.0
    %564 = vmatprep.subr.mxu0 0.0
    %565 = vmatpush1.msra.mxu0 0.0
    %566 = vmatprep.subr.mxu0 0.0
    %567 = vmatpush1.msra.mxu0 0.0
    %568 = vmatprep.subr.mxu0 0.0
    %569 = vmatpush1.msra.mxu0 0.0
    %570 = vmatprep.subr.mxu0 0.0
    %571 = vmatpush1.msra.mxu0 0.0
    %572 = vmatprep.subr.mxu0 0.0
    %573 = vmatpush1.msra.mxu0 0.0
    %574 = vmatprep.subr.mxu0 0.0
    %575 = vmatpush1.msra.mxu0 0.0
    %576 = vmatprep.subr.mxu0 0.0
    %577 = vmatpush1.msra.mxu0 0.0
    %578 = vmatprep.subr.mxu0 0.0
    %579 = vmatpush1.msra.mxu0 0.0
    %580 = vmatprep.subr.mxu0 0.0
    %581 = vmatpush1.msra.mxu0 0.0
    %582 = vmatprep.subr.mxu0 0.0
    %583 = vmatpush1.msra.mxu0 0.0
    %584 = vmatprep.subr.mxu0 0.0
    %585 = vmatpush1.msra.mxu0 0.0
    %586 = vmatprep.subr.mxu0 0.0
    %587 = vmatpush1.msra.mxu0 0.0
    %588 = vmatprep.subr.mxu0 0.0
    %589 = vmatpush1.msra.mxu0 0.0
    %590 = vmatprep.subr.mxu0 0.0
    %591 = vmatpush1.msra.mxu0 0.0
    %592 = vmatprep.subr.mxu0 0.0
    %593 = vmatpush1.msra.mxu0 0.0
    %594 = vmatprep.subr.mxu0 0.0
    %595 = vmatpush1.msra.mxu0 0.0
    %596 = vmatprep.subr.mxu0 0.0
    %597 = vmatpush1.msra.mxu0 0.0
    %598 = vmatprep.subr.mxu0 0.0
    %599 = vmatpush1.msra.mxu0 0.0
    %600 = vmatprep.subr.mxu0 0.0
    %601 = vmatpush1.msra.mxu0 0.0
    %602 = vmatprep.subr.mxu0 0.0
    %603 = vmatpush1.msra.mxu0 0.0
    %604 = vmatprep.subr.mxu0 0.0
    %605 = vmatpush1.msra.mxu0 0.0
    %606 = vmatprep.subr.mxu0 0.0
    %607 = vmatpush1.msra.mxu0 0.0
    %608 = vmatprep.subr.mxu0 0.0
    %609 = vmatpush1.msra.mxu0 0.0
    %610 = vmatprep.subr.mxu0 0.0
    %611 = vmatpush1.msra.mxu0 0.0
    %612 = vmatprep.subr.mxu0 0.0
    %613 = vmatpush1.msra.mxu0 0.0
    %614 = vmatprep.mubr.f32.mxu0 0.0
    %615 = vmatmul.mubr.f32.gmra.mrb[0].mxu0 %v545
    %v616 = vpop.f32.mrb[0].mxu0
    %v617 = vadd.f32 0.0, %v616
    %v618 = vpop.f32.mrb[0].mxu0
    %619 = vmatprep.mubr.f32.mxu0 0.0
    %620 = vmatmul.mubr.f32.gmra.mrb[0].mxu0 %v548
    %v621 = vpop.f32.mrb[0].mxu0
    %v622 = vadd.f32 0.0, %v621
    %v623 = vpop.f32.mrb[0].mxu0
    %624 = vdwg.mxu0
    %v626 = vsel %vm57, %v39, 0
    %v629 = vsel %vm57, %v40, 0
    %631 = vmatprep.subr.mxu0 0.0
    %632 = vmatpush1.msra.mxu0 %v55
    %633 = vmatprep.subr.mxu0 0.0
    %634 = vmatpush1.msra.mxu0 %v56
    %635 = vmatprep.subr.mxu0 0.0
    %636 = vmatpush1.msra.mxu0 0.0
    %637 = vmatprep.subr.mxu0 0.0
    %638 = vmatpush1.msra.mxu0 0.0
    %639 = vmatprep.subr.mxu0 0.0
    %640 = vmatpush1.msra.mxu0 0.0
    %641 = vmatprep.subr.mxu0 0.0
    %642 = vmatpush1.msra.mxu0 0.0
    %643 = vmatprep.subr.mxu0 0.0
    %644 = vmatpush1.msra.mxu0 0.0
    %645 = vmatprep.subr.mxu0 0.0
    %646 = vmatpush1.msra.mxu0 0.0
    %647 = vmatprep.subr.mxu0 0.0
    %648 = vmatpush1.msra.mxu0 0.0
    %649 = vmatprep.subr.mxu0 0.0
    %650 = vmatpush1.msra.mxu0 0.0
    %651 = vmatprep.subr.mxu0 0.0
    %652 = vmatpush1.msra.mxu0 0.0
    %653 = vmatprep.subr.mxu0 0.0
    %654 = vmatpush1.msra.mxu0 0.0
    %655 = vmatprep.subr.mxu0 0.0
    %656 = vmatpush1.msra.mxu0 0.0
    %657 = vmatprep.subr.mxu0 0.0
    %658 = vmatpush1.msra.mxu0 0.0
    %659 = vmatprep.subr.mxu0 0.0
    %660 = vmatpush1.msra.mxu0 0.0
    %661 = vmatprep.subr.mxu0 0.0
    %662 = vmatpush1.msra.mxu0 0.0
    %663 = vmatprep.subr.mxu0 0.0
    %664 = vmatpush1.msra.mxu0 0.0
    %665 = vmatprep.subr.mxu0 0.0
    %666 = vmatpush1.msra.mxu0 0.0
    %667 = vmatprep.subr.mxu0 0.0
    %668 = vmatpush1.msra.mxu0 0.0
    %669 = vmatprep.subr.mxu0 0.0
    %670 = vmatpush1.msra.mxu0 0.0
    %671 = vmatprep.subr.mxu0 0.0
    %672 = vmatpush1.msra.mxu0 0.0
    %673 = vmatprep.subr.mxu0 0.0
    %674 = vmatpush1.msra.mxu0 0.0
    %675 = vmatprep.subr.mxu0 0.0
    %676 = vmatpush1.msra.mxu0 0.0
    %677 = vmatprep.subr.mxu0 0.0
    %678 = vmatpush1.msra.mxu0 0.0
    %679 = vmatprep.subr.mxu0 0.0
    %680 = vmatpush1.msra.mxu0 0.0
    %681 = vmatprep.subr.mxu0 0.0
    %682 = vmatpush1.msra.mxu0 0.0
    %683 = vmatprep.subr.mxu0 0.0
    %684 = vmatpush1.msra.mxu0 0.0
    %685 = vmatprep.subr.mxu0 0.0
    %686 = vmatpush1.msra.mxu0 0.0
    %687 = vmatprep.subr.mxu0 0.0
    %688 = vmatpush1.msra.mxu0 0.0
    %689 = vmatprep.subr.mxu0 0.0
    %690 = vmatpush1.msra.mxu0 0.0
    %691 = vmatprep.subr.mxu0 0.0
    %692 = vmatpush1.msra.mxu0 0.0
    %693 = vmatprep.subr.mxu0 0.0
    %694 = vmatpush1.msra.mxu0 0.0
    %695 = vmatprep.mubr.f32.mxu0 0.0
    %696 = vmatmul.mubr.f32.gmra.mrb[0].mxu0 %v626
    %v697 = vpop.f32.mrb[0].mxu0
    %v698 = vadd.f32 0.0, %v697
    %v699 = vpop.f32.mrb[0].mxu0
    %700 = vmatprep.mubr.f32.mxu0 0.0
    %701 = vmatmul.mubr.f32.gmra.mrb[0].mxu0 %v629
    %v702 = vpop.f32.mrb[0].mxu0
    %v703 = vadd.f32 0.0, %v702
    %v704 = vpop.f32.mrb[0].mxu0
    %705 = vdwg.mxu0
    %v706 = vld [vmem:[%s2] sm:$0xff]
    %v707 = vlaneseq
    %v708 = vshrl.u32 %v707, 7
    %v709 = vsub.s32 0, %v708
    %v710 = vrot.slane %v21, %v709
    %vm711 = vcmask 64512
    %v713 = vsel %vm711, %v131, 0
    %v716 = vsel %vm711, %v136, 0
    %v719 = vsel %vm711, %v212, 0
    %v722 = vsel %vm711, %v217, 0
    %v725 = vsel %vm711, %v293, 0
    %v728 = vsel %vm711, %v298, 0
    %v731 = vsel %vm711, %v374, 0
    %v734 = vsel %vm711, %v379, 0
    %v737 = vsel %vm711, %v455, 0
    %v740 = vsel %vm711, %v460, 0
    %v743 = vsel %vm711, %v536, 0
    %v746 = vsel %vm711, %v541, 0
    %v749 = vsel %vm711, %v617, 0
    %v752 = vsel %vm711, %v622, 0
    %v755 = vsel %vm711, %v698, 0
    %v758 = vsel %vm711, %v703, 0
    %760 = vmatprep.subr.mxu0 0.0
    %761 = vmatpush1.msra.mxu0 %v706
    %762 = vmatprep.subr.mxu0 0.0
    %763 = vmatpush1.msra.mxu0 0.0
    %764 = vmatprep.subr.mxu0 0.0
    %765 = vmatpush1.msra.mxu0 0.0
    %766 = vmatprep.subr.mxu0 0.0
    %767 = vmatpush1.msra.mxu0 0.0
    %768 = vmatprep.subr.mxu0 0.0
    %769 = vmatpush1.msra.mxu0 0.0
    %770 = vmatprep.subr.mxu0 0.0
    %771 = vmatpush1.msra.mxu0 0.0
    %772 = vmatprep.subr.mxu0 0.0
    %773 = vmatpush1.msra.mxu0 0.0
    %774 = vmatprep.subr.mxu0 0.0
    %775 = vmatpush1.msra.mxu0 0.0
    %776 = vmatprep.subr.mxu0 0.0
    %777 = vmatpush1.msra.mxu0 0.0
    %778 = vmatprep.subr.mxu0 0.0
    %779 = vmatpush1.msra.mxu0 0.0
    %780 = vmatprep.subr.mxu0 0.0
    %781 = vmatpush1.msra.mxu0 0.0
    %782 = vmatprep.subr.mxu0 0.0
    %783 = vmatpush1.msra.mxu0 0.0
    %784 = vmatprep.subr.mxu0 0.0
    %785 = vmatpush1.msra.mxu0 0.0
    %786 = vmatprep.subr.mxu0 0.0
    %787 = vmatpush1.msra.mxu0 0.0
    %788 = vmatprep.subr.mxu0 0.0
    %789 = vmatpush1.msra.mxu0 0.0
    %790 = vmatprep.subr.mxu0 0.0
    %791 = vmatpush1.msra.mxu0 0.0
    %792 = vmatprep.subr.mxu0 0.0
    %793 = vmatpush1.msra.mxu0 0.0
    %794 = vmatprep.subr.mxu0 0.0
    %795 = vmatpush1.msra.mxu0 0.0
    %796 = vmatprep.subr.mxu0 0.0
    %797 = vmatpush1.msra.mxu0 0.0
    %798 = vmatprep.subr.mxu0 0.0
    %799 = vmatpush1.msra.mxu0 0.0
    %800 = vmatprep.subr.mxu0 0.0
    %801 = vmatpush1.msra.mxu0 0.0
    %802 = vmatprep.subr.mxu0 0.0
    %803 = vmatpush1.msra.mxu0 0.0
    %804 = vmatprep.subr.mxu0 0.0
    %805 = vmatpush1.msra.mxu0 0.0
    %806 = vmatprep.subr.mxu0 0.0
    %807 = vmatpush1.msra.mxu0 0.0
    %808 = vmatprep.subr.mxu0 0.0
    %809 = vmatpush1.msra.mxu0 0.0
    %810 = vmatprep.subr.mxu0 0.0
    %811 = vmatpush1.msra.mxu0 0.0
    %812 = vmatprep.subr.mxu0 0.0
    %813 = vmatpush1.msra.mxu0 0.0
    %814 = vmatprep.subr.mxu0 0.0
    %815 = vmatpush1.msra.mxu0 0.0
    %816 = vmatprep.subr.mxu0 0.0
    %817 = vmatpush1.msra.mxu0 0.0
    %818 = vmatprep.subr.mxu0 0.0
    %819 = vmatpush1.msra.mxu0 0.0
    %820 = vmatprep.subr.mxu0 0.0
    %821 = vmatpush1.msra.mxu0 0.0
    %822 = vmatprep.subr.mxu0 0.0
    %823 = vmatpush1.msra.mxu0 0.0
    %824 = vmatprep.mubr.f32.mxu0 0.0
    %825 = vmatmul.mubr.f32.gmra.mrb[0].mxu0 %v713
    %v826 = vpop.f32.mrb[0].mxu0
    %v827 = vadd.f32 %v710, %v826
    %v828 = vpop.f32.mrb[0].mxu0
    %829 = vmatprep.mubr.f32.mxu0 0.0
    %830 = vmatmul.mubr.f32.gmra.mrb[0].mxu0 %v716
    %v831 = vpop.f32.mrb[0].mxu0
    %v832 = vadd.f32 %v710, %v831
    %v833 = vpop.f32.mrb[0].mxu0
    %834 = vmatprep.mubr.f32.mxu0 0.0
    %835 = vmatmul.mubr.f32.gmra.mrb[0].mxu0 %v719
    %v836 = vpop.f32.mrb[0].mxu0
    %v837 = vadd.f32 %v710, %v836
    %v838 = vpop.f32.mrb[0].mxu0
    %839 = vmatprep.mubr.f32.mxu0 0.0
    %840 = vmatmul.mubr.f32.gmra.mrb[0].mxu0 %v722
    %v841 = vpop.f32.mrb[0].mxu0
    %v842 = vadd.f32 %v710, %v841
    %v843 = vpop.f32.mrb[0].mxu0
    %844 = vmatprep.mubr.f32.mxu0 0.0
    %845 = vmatmul.mubr.f32.gmra.mrb[0].mxu0 %v725
    %v846 = vpop.f32.mrb[0].mxu0
    %v847 = vadd.f32 %v710, %v846
    %v848 = vpop.f32.mrb[0].mxu0
    %849 = vmatprep.mubr.f32.mxu0 0.0
    %850 = vmatmul.mubr.f32.gmra.mrb[0].mxu0 %v728
    %v851 = vpop.f32.mrb[0].mxu0
    %v852 = vadd.f32 %v710, %v851
    %v853 = vpop.f32.mrb[0].mxu0
    %854 = vmatprep.mubr.f32.mxu0 0.0
    %855 = vmatmul.mubr.f32.gmra.mrb[0].mxu0 %v731
    %v856 = vpop.f32.mrb[0].mxu0
    %v857 = vadd.f32 %v710, %v856
    %v858 = vpop.f32.mrb[0].mxu0
    %859 = vmatprep.mubr.f32.mxu0 0.0
    %860 = vmatmul.mubr.f32.gmra.mrb[0].mxu0 %v734
    %v861 = vpop.f32.mrb[0].mxu0
    %v862 = vadd.f32 %v710, %v861
    %v863 = vpop.f32.mrb[0].mxu0
    %864 = vmatprep.mubr.f32.mxu0 0.0
    %865 = vmatmul.mubr.f32.gmra.mrb[0].mxu0 %v737
    %v866 = vpop.f32.mrb[0].mxu0
    %v867 = vadd.f32 %v710, %v866
    %v868 = vpop.f32.mrb[0].mxu0
    %869 = vmatprep.mubr.f32.mxu0 0.0
    %870 = vmatmul.mubr.f32.gmra.mrb[0].mxu0 %v740
    %v871 = vpop.f32.mrb[0].mxu0
    %v872 = vadd.f32 %v710, %v871
    %v873 = vpop.f32.mrb[0].mxu0
    %874 = vmatprep.mubr.f32.mxu0 0.0
    %875 = vmatmul.mubr.f32.gmra.mrb[0].mxu0 %v743
    %v876 = vpop.f32.mrb[0].mxu0
    %v877 = vadd.f32 %v710, %v876
    %v878 = vpop.f32.mrb[0].mxu0
    %879 = vmatprep.mubr.f32.mxu0 0.0
    %880 = vmatmul.mubr.f32.gmra.mrb[0].mxu0 %v746
    %v881 = vpop.f32.mrb[0].mxu0
    %v882 = vadd.f32 %v710, %v881
    %v883 = vpop.f32.mrb[0].mxu0
    %884 = vmatprep.mubr.f32.mxu0 0.0
    %885 = vmatmul.mubr.f32.gmra.mrb[0].mxu0 %v749
    %v886 = vpop.f32.mrb[0].mxu0
    %v887 = vadd.f32 %v710, %v886
    %v888 = vpop.f32.mrb[0].mxu0
    %889 = vmatprep.mubr.f32.mxu0 0.0
    %890 = vmatmul.mubr.f32.gmra.mrb[0].mxu0 %v752
    %v891 = vpop.f32.mrb[0].mxu0
    %v892 = vadd.f32 %v710, %v891
    %v893 = vpop.f32.mrb[0].mxu0
    %894 = vmatprep.mubr.f32.mxu0 0.0
    %895 = vmatmul.mubr.f32.gmra.mrb[0].mxu0 %v755
    %v896 = vpop.f32.mrb[0].mxu0
    %v897 = vadd.f32 %v710, %v896
    %v898 = vpop.f32.mrb[0].mxu0
    %899 = vmatprep.mubr.f32.mxu0 0.0
    %900 = vmatmul.mubr.f32.gmra.mrb[0].mxu0 %v758
    %v901 = vpop.f32.mrb[0].mxu0
    %v902 = vadd.f32 %v710, %v901
    %v903 = vpop.f32.mrb[0].mxu0
    %904 = vdwg.mxu0
    %v905 = vmax.f32 %v827, 0.0
    %v906 = vmax.f32 %v832, 0.0
    %v907 = vmax.f32 %v837, 0.0
    %v908 = vmax.f32 %v842, 0.0
    %v909 = vmax.f32 %v847, 0.0
    %v910 = vmax.f32 %v852, 0.0
    %v911 = vmax.f32 %v857, 0.0
    %v912 = vmax.f32 %v862, 0.0
    %v913 = vmax.f32 %v867, 0.0
    %v914 = vmax.f32 %v872, 0.0
    %v915 = vmax.f32 %v877, 0.0
    %v916 = vmax.f32 %v882, 0.0
    %v917 = vmax.f32 %v887, 0.0
    %v918 = vmax.f32 %v892, 0.0
    %v919 = vmax.f32 %v897, 0.0
    %v920 = vmax.f32 %v902, 0.0
    %921 = vmatprep.subr.mxu0 0.0
    %922 = vmatpush1.msra.mxu0 %v905
    %923 = vmatprep.subr.mxu0 0.0
    %924 = vmatpush1.msra.mxu0 %v906
    %925 = vmatprep.subr.mxu0 0.0
    %926 = vmatpush1.msra.mxu0 0.0
    %927 = vmatprep.subr.mxu0 0.0
    %928 = vmatpush1.msra.mxu0 0.0
    %929 = vmatprep.subr.mxu0 0.0
    %930 = vmatpush1.msra.mxu0 0.0
    %931 = vmatprep.subr.mxu0 0.0
    %932 = vmatpush1.msra.mxu0 0.0
    %933 = vmatprep.subr.mxu0 0.0
    %934 = vmatpush1.msra.mxu0 0.0
    %935 = vmatprep.subr.mxu0 0.0
    %936 = vmatpush1.msra.mxu0 0.0
    %937 = vmatprep.subr.mxu0 0.0
    %938 = vmatpush1.msra.mxu0 0.0
    %939 = vmatprep.subr.mxu0 0.0
    %940 = vmatpush1.msra.mxu0 0.0
    %941 = vmatprep.subr.mxu0 0.0
    %942 = vmatpush1.msra.mxu0 0.0
    %943 = vmatprep.subr.mxu0 0.0
    %944 = vmatpush1.msra.mxu0 0.0
    %945 = vmatprep.subr.mxu0 0.0
    %946 = vmatpush1.msra.mxu0 0.0
    %947 = vmatprep.subr.mxu0 0.0
    %948 = vmatpush1.msra.mxu0 0.0
    %949 = vmatprep.subr.mxu0 0.0
    %950 = vmatpush1.msra.mxu0 0.0
    %951 = vmatprep.subr.mxu0 0.0
    %952 = vmatpush1.msra.mxu0 0.0
    %953 = vmatprep.subr.mxu0 0.0
    %954 = vmatpush1.msra.mxu0 0.0
    %955 = vmatprep.subr.mxu0 0.0
    %956 = vmatpush1.msra.mxu0 0.0
    %957 = vmatprep.subr.mxu0 0.0
    %958 = vmatpush1.msra.mxu0 0.0
    %959 = vmatprep.subr.mxu0 0.0
    %960 = vmatpush1.msra.mxu0 0.0
    %961 = vmatprep.subr.mxu0 0.0
    %962 = vmatpush1.msra.mxu0 0.0
    %963 = vmatprep.subr.mxu0 0.0
    %964 = vmatpush1.msra.mxu0 0.0
    %965 = vmatprep.subr.mxu0 0.0
    %966 = vmatpush1.msra.mxu0 0.0
    %967 = vmatprep.subr.mxu0 0.0
    %968 = vmatpush1.msra.mxu0 0.0
    %969 = vmatprep.subr.mxu0 0.0
    %970 = vmatpush1.msra.mxu0 0.0
    %971 = vmatprep.subr.mxu0 0.0
    %972 = vmatpush1.msra.mxu0 0.0
    %973 = vmatprep.subr.mxu0 0.0
    %974 = vmatpush1.msra.mxu0 0.0
    %975 = vmatprep.subr.mxu0 0.0
    %976 = vmatpush1.msra.mxu0 0.0
    %977 = vmatprep.subr.mxu0 0.0
    %978 = vmatpush1.msra.mxu0 0.0
    %979 = vmatprep.subr.mxu0 0.0
    %980 = vmatpush1.msra.mxu0 0.0
    %981 = vmatprep.subr.mxu0 0.0
    %982 = vmatpush1.msra.mxu0 0.0
    %983 = vmatprep.subr.mxu0 0.0
    %984 = vmatpush1.msra.mxu0 0.0
    %985 = vmatprep.mubr.f32.mxu0 0.0
    %986 = vmatmul.mubr.f32.gmra.mrb[0].mxu0 %v59
    %v987 = vpop.f32.mrb[0].mxu0
    %v988 = vadd.f32 0.0, %v987
    %v989 = vpop.f32.mrb[0].mxu0
    %990 = vmatprep.mubr.f32.mxu0 0.0
    %991 = vmatmul.mubr.f32.gmra.mrb[0].mxu0 %v62
    %v992 = vpop.f32.mrb[0].mxu0
    %v993 = vadd.f32 0.0, %v992
    %v994 = vpop.f32.mrb[0].mxu0
    %995 = vdwg.mxu0
    %996 = vmatprep.subr.mxu0 0.0
    %997 = vmatpush1.msra.mxu0 %v907
    %998 = vmatprep.subr.mxu0 0.0
    %999 = vmatpush1.msra.mxu0 %v908
    %1000 = vmatprep.subr.mxu0 0.0
    %1001 = vmatpush1.msra.mxu0 0.0
    %1002 = vmatprep.subr.mxu0 0.0
    %1003 = vmatpush1.msra.mxu0 0.0
    %1004 = vmatprep.subr.mxu0 0.0
    %1005 = vmatpush1.msra.mxu0 0.0
    %1006 = vmatprep.subr.mxu0 0.0
    %1007 = vmatpush1.msra.mxu0 0.0
    %1008 = vmatprep.subr.mxu0 0.0
    %1009 = vmatpush1.msra.mxu0 0.0
    %1010 = vmatprep.subr.mxu0 0.0
    %1011 = vmatpush1.msra.mxu0 0.0
    %1012 = vmatprep.subr.mxu0 0.0
    %1013 = vmatpush1.msra.mxu0 0.0
    %1014 = vmatprep.subr.mxu0 0.0
    %1015 = vmatpush1.msra.mxu0 0.0
    %1016 = vmatprep.subr.mxu0 0.0
    %1017 = vmatpush1.msra.mxu0 0.0
    %1018 = vmatprep.subr.mxu0 0.0
    %1019 = vmatpush1.msra.mxu0 0.0
    %1020 = vmatprep.subr.mxu0 0.0
    %1021 = vmatpush1.msra.mxu0 0.0
    %1022 = vmatprep.subr.mxu0 0.0
    %1023 = vmatpush1.msra.mxu0 0.0
    %1024 = vmatprep.subr.mxu0 0.0
    %1025 = vmatpush1.msra.mxu0 0.0
    %1026 = vmatprep.subr.mxu0 0.0
    %1027 = vmatpush1.msra.mxu0 0.0
    %1028 = vmatprep.subr.mxu0 0.0
    %1029 = vmatpush1.msra.mxu0 0.0
    %1030 = vmatprep.subr.mxu0 0.0
    %1031 = vmatpush1.msra.mxu0 0.0
    %1032 = vmatprep.subr.mxu0 0.0
    %1033 = vmatpush1.msra.mxu0 0.0
    %1034 = vmatprep.subr.mxu0 0.0
    %1035 = vmatpush1.msra.mxu0 0.0
    %1036 = vmatprep.subr.mxu0 0.0
    %1037 = vmatpush1.msra.mxu0 0.0
    %1038 = vmatprep.subr.mxu0 0.0
    %1039 = vmatpush1.msra.mxu0 0.0
    %1040 = vmatprep.subr.mxu0 0.0
    %1041 = vmatpush1.msra.mxu0 0.0
    %1042 = vmatprep.subr.mxu0 0.0
    %1043 = vmatpush1.msra.mxu0 0.0
    %1044 = vmatprep.subr.mxu0 0.0
    %1045 = vmatpush1.msra.mxu0 0.0
    %1046 = vmatprep.subr.mxu0 0.0
    %1047 = vmatpush1.msra.mxu0 0.0
    %1048 = vmatprep.subr.mxu0 0.0
    %1049 = vmatpush1.msra.mxu0 0.0
    %1050 = vmatprep.subr.mxu0 0.0
    %1051 = vmatpush1.msra.mxu0 0.0
    %1052 = vmatprep.subr.mxu0 0.0
    %1053 = vmatpush1.msra.mxu0 0.0
    %1054 = vmatprep.subr.mxu0 0.0
    %1055 = vmatpush1.msra.mxu0 0.0
    %1056 = vmatprep.subr.mxu0 0.0
    %1057 = vmatpush1.msra.mxu0 0.0
    %1058 = vmatprep.subr.mxu0 0.0
    %1059 = vmatpush1.msra.mxu0 0.0
    %1060 = vmatprep.mubr.f32.mxu0 0.0
    %1061 = vmatmul.mubr.f32.gmra.mrb[0].mxu0 %v140
    %v1062 = vpop.f32.mrb[0].mxu0
    %v1063 = vadd.f32 0.0, %v1062
    %v1064 = vpop.f32.mrb[0].mxu0
    %1065 = vmatprep.mubr.f32.mxu0 0.0
    %1066 = vmatmul.mubr.f32.gmra.mrb[0].mxu0 %v143
    %v1067 = vpop.f32.mrb[0].mxu0
    %v1068 = vadd.f32 0.0, %v1067
    %v1069 = vpop.f32.mrb[0].mxu0
    %1070 = vdwg.mxu0
    %1071 = vmatprep.subr.mxu0 0.0
    %1072 = vmatpush1.msra.mxu0 %v909
    %1073 = vmatprep.subr.mxu0 0.0
    %1074 = vmatpush1.msra.mxu0 %v910
    %1075 = vmatprep.subr.mxu0 0.0
    %1076 = vmatpush1.msra.mxu0 0.0
    %1077 = vmatprep.subr.mxu0 0.0
    %1078 = vmatpush1.msra.mxu0 0.0
    %1079 = vmatprep.subr.mxu0 0.0
    %1080 = vmatpush1.msra.mxu0 0.0
    %1081 = vmatprep.subr.mxu0 0.0
    %1082 = vmatpush1.msra.mxu0 0.0
    %1083 = vmatprep.subr.mxu0 0.0
    %1084 = vmatpush1.msra.mxu0 0.0
    %1085 = vmatprep.subr.mxu0 0.0
    %1086 = vmatpush1.msra.mxu0 0.0
    %1087 = vmatprep.subr.mxu0 0.0
    %1088 = vmatpush1.msra.mxu0 0.0
    %1089 = vmatprep.subr.mxu0 0.0
    %1090 = vmatpush1.msra.mxu0 0.0
    %1091 = vmatprep.subr.mxu0 0.0
    %1092 = vmatpush1.msra.mxu0 0.0
    %1093 = vmatprep.subr.mxu0 0.0
    %1094 = vmatpush1.msra.mxu0 0.0
    %1095 = vmatprep.subr.mxu0 0.0
    %1096 = vmatpush1.msra.mxu0 0.0
    %1097 = vmatprep.subr.mxu0 0.0
    %1098 = vmatpush1.msra.mxu0 0.0
    %1099 = vmatprep.subr.mxu0 0.0
    %1100 = vmatpush1.msra.mxu0 0.0
    %1101 = vmatprep.subr.mxu0 0.0
    %1102 = vmatpush1.msra.mxu0 0.0
    %1103 = vmatprep.subr.mxu0 0.0
    %1104 = vmatpush1.msra.mxu0 0.0
    %1105 = vmatprep.subr.mxu0 0.0
    %1106 = vmatpush1.msra.mxu0 0.0
    %1107 = vmatprep.subr.mxu0 0.0
    %1108 = vmatpush1.msra.mxu0 0.0
    %1109 = vmatprep.subr.mxu0 0.0
    %1110 = vmatpush1.msra.mxu0 0.0
    %1111 = vmatprep.subr.mxu0 0.0
    %1112 = vmatpush1.msra.mxu0 0.0
    %1113 = vmatprep.subr.mxu0 0.0
    %1114 = vmatpush1.msra.mxu0 0.0
    %1115 = vmatprep.subr.mxu0 0.0
    %1116 = vmatpush1.msra.mxu0 0.0
    %1117 = vmatprep.subr.mxu0 0.0
    %1118 = vmatpush1.msra.mxu0 0.0
    %1119 = vmatprep.subr.mxu0 0.0
    %1120 = vmatpush1.msra.mxu0 0.0
    %1121 = vmatprep.subr.mxu0 0.0
    %1122 = vmatpush1.msra.mxu0 0.0
    %1123 = vmatprep.subr.mxu0 0.0
    %1124 = vmatpush1.msra.mxu0 0.0
    %1125 = vmatprep.subr.mxu0 0.0
    %1126 = vmatpush1.msra.mxu0 0.0
    %1127 = vmatprep.subr.mxu0 0.0
    %1128 = vmatpush1.msra.mxu0 0.0
    %1129 = vmatprep.subr.mxu0 0.0
    %1130 = vmatpush1.msra.mxu0 0.0
    %1131 = vmatprep.subr.mxu0 0.0
    %1132 = vmatpush1.msra.mxu0 0.0
    %1133 = vmatprep.subr.mxu0 0.0
    %1134 = vmatpush1.msra.mxu0 0.0
    %1135 = vmatprep.mubr.f32.mxu0 0.0
    %1136 = vmatmul.mubr.f32.gmra.mrb[0].mxu0 %v221
    %v1137 = vpop.f32.mrb[0].mxu0
    %v1138 = vadd.f32 0.0, %v1137
    %v1139 = vpop.f32.mrb[0].mxu0
    %1140 = vmatprep.mubr.f32.mxu0 0.0
    %1141 = vmatmul.mubr.f32.gmra.mrb[0].mxu0 %v224
    %v1142 = vpop.f32.mrb[0].mxu0
    %v1143 = vadd.f32 0.0, %v1142
    %v1144 = vpop.f32.mrb[0].mxu0
    %1145 = vdwg.mxu0
    %1146 = vmatprep.subr.mxu0 0.0
    %1147 = vmatpush1.msra.mxu0 %v911
    %1148 = vmatprep.subr.mxu0 0.0
    %1149 = vmatpush1.msra.mxu0 %v912
    %1150 = vmatprep.subr.mxu0 0.0
    %1151 = vmatpush1.msra.mxu0 0.0
    %1152 = vmatprep.subr.mxu0 0.0
    %1153 = vmatpush1.msra.mxu0 0.0
    %1154 = vmatprep.subr.mxu0 0.0
    %1155 = vmatpush1.msra.mxu0 0.0
    %1156 = vmatprep.subr.mxu0 0.0
    %1157 = vmatpush1.msra.mxu0 0.0
    %1158 = vmatprep.subr.mxu0 0.0
    %1159 = vmatpush1.msra.mxu0 0.0
    %1160 = vmatprep.subr.mxu0 0.0
    %1161 = vmatpush1.msra.mxu0 0.0
    %1162 = vmatprep.subr.mxu0 0.0
    %1163 = vmatpush1.msra.mxu0 0.0
    %1164 = vmatprep.subr.mxu0 0.0
    %1165 = vmatpush1.msra.mxu0 0.0
    %1166 = vmatprep.subr.mxu0 0.0
    %1167 = vmatpush1.msra.mxu0 0.0
    %1168 = vmatprep.subr.mxu0 0.0
    %1169 = vmatpush1.msra.mxu0 0.0
    %1170 = vmatprep.subr.mxu0 0.0
    %1171 = vmatpush1.msra.mxu0 0.0
    %1172 = vmatprep.subr.mxu0 0.0
    %1173 = vmatpush1.msra.mxu0 0.0
    %1174 = vmatprep.subr.mxu0 0.0
    %1175 = vmatpush1.msra.mxu0 0.0
    %1176 = vmatprep.subr.mxu0 0.0
    %1177 = vmatpush1.msra.mxu0 0.0
    %1178 = vmatprep.subr.mxu0 0.0
    %1179 = vmatpush1.msra.mxu0 0.0
    %1180 = vmatprep.subr.mxu0 0.0
    %1181 = vmatpush1.msra.mxu0 0.0
    %1182 = vmatprep.subr.mxu0 0.0
    %1183 = vmatpush1.msra.mxu0 0.0
    %1184 = vmatprep.subr.mxu0 0.0
    %1185 = vmatpush1.msra.mxu0 0.0
    %1186 = vmatprep.subr.mxu0 0.0
    %1187 = vmatpush1.msra.mxu0 0.0
    %1188 = vmatprep.subr.mxu0 0.0
    %1189 = vmatpush1.msra.mxu0 0.0
    %1190 = vmatprep.subr.mxu0 0.0
    %1191 = vmatpush1.msra.mxu0 0.0
    %1192 = vmatprep.subr.mxu0 0.0
    %1193 = vmatpush1.msra.mxu0 0.0
    %1194 = vmatprep.subr.mxu0 0.0
    %1195 = vmatpush1.msra.mxu0 0.0
    %1196 = vmatprep.subr.mxu0 0.0
    %1197 = vmatpush1.msra.mxu0 0.0
    %1198 = vmatprep.subr.mxu0 0.0
    %1199 = vmatpush1.msra.mxu0 0.0
    %1200 = vmatprep.subr.mxu0 0.0
    %1201 = vmatpush1.msra.mxu0 0.0
    %1202 = vmatprep.subr.mxu0 0.0
    %1203 = vmatpush1.msra.mxu0 0.0
    %1204 = vmatprep.subr.mxu0 0.0
    %1205 = vmatpush1.msra.mxu0 0.0
    %1206 = vmatprep.subr.mxu0 0.0
    %1207 = vmatpush1.msra.mxu0 0.0
    %1208 = vmatprep.subr.mxu0 0.0
    %1209 = vmatpush1.msra.mxu0 0.0
    %1210 = vmatprep.mubr.f32.mxu0 0.0
    %1211 = vmatmul.mubr.f32.gmra.mrb[0].mxu0 %v302
    %v1212 = vpop.f32.mrb[0].mxu0
    %v1213 = vadd.f32 0.0, %v1212
    %v1214 = vpop.f32.mrb[0].mxu0
    %1215 = vmatprep.mubr.f32.mxu0 0.0
    %1216 = vmatmul.mubr.f32.gmra.mrb[0].mxu0 %v305
    %v1217 = vpop.f32.mrb[0].mxu0
    %v1218 = vadd.f32 0.0, %v1217
    %v1219 = vpop.f32.mrb[0].mxu0
    %1220 = vdwg.mxu0
    %1221 = vmatprep.subr.mxu0 0.0
    %1222 = vmatpush1.msra.mxu0 %v913
    %1223 = vmatprep.subr.mxu0 0.0
    %1224 = vmatpush1.msra.mxu0 %v914
    %1225 = vmatprep.subr.mxu0 0.0
    %1226 = vmatpush1.msra.mxu0 0.0
    %1227 = vmatprep.subr.mxu0 0.0
    %1228 = vmatpush1.msra.mxu0 0.0
    %1229 = vmatprep.subr.mxu0 0.0
    %1230 = vmatpush1.msra.mxu0 0.0
    %1231 = vmatprep.subr.mxu0 0.0
    %1232 = vmatpush1.msra.mxu0 0.0
    %1233 = vmatprep.subr.mxu0 0.0
    %1234 = vmatpush1.msra.mxu0 0.0
    %1235 = vmatprep.subr.mxu0 0.0
    %1236 = vmatpush1.msra.mxu0 0.0
    %1237 = vmatprep.subr.mxu0 0.0
    %1238 = vmatpush1.msra.mxu0 0.0
    %1239 = vmatprep.subr.mxu0 0.0
    %1240 = vmatpush1.msra.mxu0 0.0
    %1241 = vmatprep.subr.mxu0 0.0
    %1242 = vmatpush1.msra.mxu0 0.0
    %1243 = vmatprep.subr.mxu0 0.0
    %1244 = vmatpush1.msra.mxu0 0.0
    %1245 = vmatprep.subr.mxu0 0.0
    %1246 = vmatpush1.msra.mxu0 0.0
    %1247 = vmatprep.subr.mxu0 0.0
    %1248 = vmatpush1.msra.mxu0 0.0
    %1249 = vmatprep.subr.mxu0 0.0
    %1250 = vmatpush1.msra.mxu0 0.0
    %1251 = vmatprep.subr.mxu0 0.0
    %1252 = vmatpush1.msra.mxu0 0.0
    %1253 = vmatprep.subr.mxu0 0.0
    %1254 = vmatpush1.msra.mxu0 0.0
    %1255 = vmatprep.subr.mxu0 0.0
    %1256 = vmatpush1.msra.mxu0 0.0
    %1257 = vmatprep.subr.mxu0 0.0
    %1258 = vmatpush1.msra.mxu0 0.0
    %1259 = vmatprep.subr.mxu0 0.0
    %1260 = vmatpush1.msra.mxu0 0.0
    %1261 = vmatprep.subr.mxu0 0.0
    %1262 = vmatpush1.msra.mxu0 0.0
    %1263 = vmatprep.subr.mxu0 0.0
    %1264 = vmatpush1.msra.mxu0 0.0
    %1265 = vmatprep.subr.mxu0 0.0
    %1266 = vmatpush1.msra.mxu0 0.0
    %1267 = vmatprep.subr.mxu0 0.0
    %1268 = vmatpush1.msra.mxu0 0.0
    %1269 = vmatprep.subr.mxu0 0.0
    %1270 = vmatpush1.msra.mxu0 0.0
    %1271 = vmatprep.subr.mxu0 0.0
    %1272 = vmatpush1.msra.mxu0 0.0
    %1273 = vmatprep.subr.mxu0 0.0
    %1274 = vmatpush1.msra.mxu0 0.0
    %1275 = vmatprep.subr.mxu0 0.0
    %1276 = vmatpush1.msra.mxu0 0.0
    %1277 = vmatprep.subr.mxu0 0.0
    %1278 = vmatpush1.msra.mxu0 0.0
    %1279 = vmatprep.subr.mxu0 0.0
    %1280 = vmatpush1.msra.mxu0 0.0
    %1281 = vmatprep.subr.mxu0 0.0
    %1282 = vmatpush1.msra.mxu0 0.0
    %1283 = vmatprep.subr.mxu0 0.0
    %1284 = vmatpush1.msra.mxu0 0.0
    %1285 = vmatprep.mubr.f32.mxu0 0.0
    %1286 = vmatmul.mubr.f32.gmra.mrb[0].mxu0 %v383
    %v1287 = vpop.f32.mrb[0].mxu0
    %v1288 = vadd.f32 0.0, %v1287
    %v1289 = vpop.f32.mrb[0].mxu0
    %1290 = vmatprep.mubr.f32.mxu0 0.0
    %1291 = vmatmul.mubr.f32.gmra.mrb[0].mxu0 %v386
    %v1292 = vpop.f32.mrb[0].mxu0
    %v1293 = vadd.f32 0.0, %v1292
    %v1294 = vpop.f32.mrb[0].mxu0
    %1295 = vdwg.mxu0
    %1296 = vmatprep.subr.mxu0 0.0
    %1297 = vmatpush1.msra.mxu0 %v915
    %1298 = vmatprep.subr.mxu0 0.0
    %1299 = vmatpush1.msra.mxu0 %v916
    %1300 = vmatprep.subr.mxu0 0.0
    %1301 = vmatpush1.msra.mxu0 0.0
    %1302 = vmatprep.subr.mxu0 0.0
    %1303 = vmatpush1.msra.mxu0 0.0
    %1304 = vmatprep.subr.mxu0 0.0
    %1305 = vmatpush1.msra.mxu0 0.0
    %1306 = vmatprep.subr.mxu0 0.0
    %1307 = vmatpush1.msra.mxu0 0.0
    %1308 = vmatprep.subr.mxu0 0.0
    %1309 = vmatpush1.msra.mxu0 0.0
    %1310 = vmatprep.subr.mxu0 0.0
    %1311 = vmatpush1.msra.mxu0 0.0
    %1312 = vmatprep.subr.mxu0 0.0
    %1313 = vmatpush1.msra.mxu0 0.0
    %1314 = vmatprep.subr.mxu0 0.0
    %1315 = vmatpush1.msra.mxu0 0.0
    %1316 = vmatprep.subr.mxu0 0.0
    %1317 = vmatpush1.msra.mxu0 0.0
    %1318 = vmatprep.subr.mxu0 0.0
    %1319 = vmatpush1.msra.mxu0 0.0
    %1320 = vmatprep.subr.mxu0 0.0
    %1321 = vmatpush1.msra.mxu0 0.0
    %1322 = vmatprep.subr.mxu0 0.0
    %1323 = vmatpush1.msra.mxu0 0.0
    %1324 = vmatprep.subr.mxu0 0.0
    %1325 = vmatpush1.msra.mxu0 0.0
    %1326 = vmatprep.subr.mxu0 0.0
    %1327 = vmatpush1.msra.mxu0 0.0
    %1328 = vmatprep.subr.mxu0 0.0
    %1329 = vmatpush1.msra.mxu0 0.0
    %1330 = vmatprep.subr.mxu0 0.0
    %1331 = vmatpush1.msra.mxu0 0.0
    %1332 = vmatprep.subr.mxu0 0.0
    %1333 = vmatpush1.msra.mxu0 0.0
    %1334 = vmatprep.subr.mxu0 0.0
    %1335 = vmatpush1.msra.mxu0 0.0
    %1336 = vmatprep.subr.mxu0 0.0
    %1337 = vmatpush1.msra.mxu0 0.0
    %1338 = vmatprep.subr.mxu0 0.0
    %1339 = vmatpush1.msra.mxu0 0.0
    %1340 = vmatprep.subr.mxu0 0.0
    %1341 = vmatpush1.msra.mxu0 0.0
    %1342 = vmatprep.subr.mxu0 0.0
    %1343 = vmatpush1.msra.mxu0 0.0
    %1344 = vmatprep.subr.mxu0 0.0
    %1345 = vmatpush1.msra.mxu0 0.0
    %1346 = vmatprep.subr.mxu0 0.0
    %1347 = vmatpush1.msra.mxu0 0.0
    %1348 = vmatprep.subr.mxu0 0.0
    %1349 = vmatpush1.msra.mxu0 0.0
    %1350 = vmatprep.subr.mxu0 0.0
    %1351 = vmatpush1.msra.mxu0 0.0
    %1352 = vmatprep.subr.mxu0 0.0
    %1353 = vmatpush1.msra.mxu0 0.0
    %1354 = vmatprep.subr.mxu0 0.0
    %1355 = vmatpush1.msra.mxu0 0.0
    %1356 = vmatprep.subr.mxu0 0.0
    %1357 = vmatpush1.msra.mxu0 0.0
    %1358 = vmatprep.subr.mxu0 0.0
    %1359 = vmatpush1.msra.mxu0 0.0
    %1360 = vmatprep.mubr.f32.mxu0 0.0
    %1361 = vmatmul.mubr.f32.gmra.mrb[0].mxu0 %v464
    %v1362 = vpop.f32.mrb[0].mxu0
    %v1363 = vadd.f32 0.0, %v1362
    %v1364 = vpop.f32.mrb[0].mxu0
    %1365 = vmatprep.mubr.f32.mxu0 0.0
    %1366 = vmatmul.mubr.f32.gmra.mrb[0].mxu0 %v467
    %v1367 = vpop.f32.mrb[0].mxu0
    %v1368 = vadd.f32 0.0, %v1367
    %v1369 = vpop.f32.mrb[0].mxu0
    %1370 = vdwg.mxu0
    %1371 = vmatprep.subr.mxu0 0.0
    %1372 = vmatpush1.msra.mxu0 %v917
    %1373 = vmatprep.subr.mxu0 0.0
    %1374 = vmatpush1.msra.mxu0 %v918
    %1375 = vmatprep.subr.mxu0 0.0
    %1376 = vmatpush1.msra.mxu0 0.0
    %1377 = vmatprep.subr.mxu0 0.0
    %1378 = vmatpush1.msra.mxu0 0.0
    %1379 = vmatprep.subr.mxu0 0.0
    %1380 = vmatpush1.msra.mxu0 0.0
    %1381 = vmatprep.subr.mxu0 0.0
    %1382 = vmatpush1.msra.mxu0 0.0
    %1383 = vmatprep.subr.mxu0 0.0
    %1384 = vmatpush1.msra.mxu0 0.0
    %1385 = vmatprep.subr.mxu0 0.0
    %1386 = vmatpush1.msra.mxu0 0.0
    %1387 = vmatprep.subr.mxu0 0.0
    %1388 = vmatpush1.msra.mxu0 0.0
    %1389 = vmatprep.subr.mxu0 0.0
    %1390 = vmatpush1.msra.mxu0 0.0
    %1391 = vmatprep.subr.mxu0 0.0
    %1392 = vmatpush1.msra.mxu0 0.0
    %1393 = vmatprep.subr.mxu0 0.0
    %1394 = vmatpush1.msra.mxu0 0.0
    %1395 = vmatprep.subr.mxu0 0.0
    %1396 = vmatpush1.msra.mxu0 0.0
    %1397 = vmatprep.subr.mxu0 0.0
    %1398 = vmatpush1.msra.mxu0 0.0
    %1399 = vmatprep.subr.mxu0 0.0
    %1400 = vmatpush1.msra.mxu0 0.0
    %1401 = vmatprep.subr.mxu0 0.0
    %1402 = vmatpush1.msra.mxu0 0.0
    %1403 = vmatprep.subr.mxu0 0.0
    %1404 = vmatpush1.msra.mxu0 0.0
    %1405 = vmatprep.subr.mxu0 0.0
    %1406 = vmatpush1.msra.mxu0 0.0
    %1407 = vmatprep.subr.mxu0 0.0
    %1408 = vmatpush1.msra.mxu0 0.0
    %1409 = vmatprep.subr.mxu0 0.0
    %1410 = vmatpush1.msra.mxu0 0.0
    %1411 = vmatprep.subr.mxu0 0.0
    %1412 = vmatpush1.msra.mxu0 0.0
    %1413 = vmatprep.subr.mxu0 0.0
    %1414 = vmatpush1.msra.mxu0 0.0
    %1415 = vmatprep.subr.mxu0 0.0
    %1416 = vmatpush1.msra.mxu0 0.0
    %1417 = vmatprep.subr.mxu0 0.0
    %1418 = vmatpush1.msra.mxu0 0.0
    %1419 = vmatprep.subr.mxu0 0.0
    %1420 = vmatpush1.msra.mxu0 0.0
    %1421 = vmatprep.subr.mxu0 0.0
    %1422 = vmatpush1.msra.mxu0 0.0
    %1423 = vmatprep.subr.mxu0 0.0
    %1424 = vmatpush1.msra.mxu0 0.0
    %1425 = vmatprep.subr.mxu0 0.0
    %1426 = vmatpush1.msra.mxu0 0.0
    %1427 = vmatprep.subr.mxu0 0.0
    %1428 = vmatpush1.msra.mxu0 0.0
    %1429 = vmatprep.subr.mxu0 0.0
    %1430 = vmatpush1.msra.mxu0 0.0
    %1431 = vmatprep.subr.mxu0 0.0
    %1432 = vmatpush1.msra.mxu0 0.0
    %1433 = vmatprep.subr.mxu0 0.0
    %1434 = vmatpush1.msra.mxu0 0.0
    %1435 = vmatprep.mubr.f32.mxu0 0.0
    %1436 = vmatmul.mubr.f32.gmra.mrb[0].mxu0 %v545
    %v1437 = vpop.f32.mrb[0].mxu0
    %v1438 = vadd.f32 0.0, %v1437
    %v1439 = vpop.f32.mrb[0].mxu0
    %1440 = vmatprep.mubr.f32.mxu0 0.0
    %1441 = vmatmul.mubr.f32.gmra.mrb[0].mxu0 %v548
    %v1442 = vpop.f32.mrb[0].mxu0
    %v1443 = vadd.f32 0.0, %v1442
    %v1444 = vpop.f32.mrb[0].mxu0
    %1445 = vdwg.mxu0
    %1446 = vmatprep.subr.mxu0 0.0
    %1447 = vmatpush1.msra.mxu0 %v919
    %1448 = vmatprep.subr.mxu0 0.0
    %1449 = vmatpush1.msra.mxu0 %v920
    %1450 = vmatprep.subr.mxu0 0.0
    %1451 = vmatpush1.msra.mxu0 0.0
    %1452 = vmatprep.subr.mxu0 0.0
    %1453 = vmatpush1.msra.mxu0 0.0
    %1454 = vmatprep.subr.mxu0 0.0
    %1455 = vmatpush1.msra.mxu0 0.0
    %1456 = vmatprep.subr.mxu0 0.0
    %1457 = vmatpush1.msra.mxu0 0.0
    %1458 = vmatprep.subr.mxu0 0.0
    %1459 = vmatpush1.msra.mxu0 0.0
    %1460 = vmatprep.subr.mxu0 0.0
    %1461 = vmatpush1.msra.mxu0 0.0
    %1462 = vmatprep.subr.mxu0 0.0
    %1463 = vmatpush1.msra.mxu0 0.0
    %1464 = vmatprep.subr.mxu0 0.0
    %1465 = vmatpush1.msra.mxu0 0.0
    %1466 = vmatprep.subr.mxu0 0.0
    %1467 = vmatpush1.msra.mxu0 0.0
    %1468 = vmatprep.subr.mxu0 0.0
    %1469 = vmatpush1.msra.mxu0 0.0
    %1470 = vmatprep.subr.mxu0 0.0
    %1471 = vmatpush1.msra.mxu0 0.0
    %1472 = vmatprep.subr.mxu0 0.0
    %1473 = vmatpush1.msra.mxu0 0.0
    %1474 = vmatprep.subr.mxu0 0.0
    %1475 = vmatpush1.msra.mxu0 0.0
    %1476 = vmatprep.subr.mxu0 0.0
    %1477 = vmatpush1.msra.mxu0 0.0
    %1478 = vmatprep.subr.mxu0 0.0
    %1479 = vmatpush1.msra.mxu0 0.0
    %1480 = vmatprep.subr.mxu0 0.0
    %1481 = vmatpush1.msra.mxu0 0.0
    %1482 = vmatprep.subr.mxu0 0.0
    %1483 = vmatpush1.msra.mxu0 0.0
    %1484 = vmatprep.subr.mxu0 0.0
    %1485 = vmatpush1.msra.mxu0 0.0
    %1486 = vmatprep.subr.mxu0 0.0
    %1487 = vmatpush1.msra.mxu0 0.0
    %1488 = vmatprep.subr.mxu0 0.0
    %1489 = vmatpush1.msra.mxu0 0.0
    %1490 = vmatprep.subr.mxu0 0.0
    %1491 = vmatpush1.msra.mxu0 0.0
    %1492 = vmatprep.subr.mxu0 0.0
    %1493 = vmatpush1.msra.mxu0 0.0
    %1494 = vmatprep.subr.mxu0 0.0
    %1495 = vmatpush1.msra.mxu0 0.0
    %1496 = vmatprep.subr.mxu0 0.0
    %1497 = vmatpush1.msra.mxu0 0.0
    %1498 = vmatprep.subr.mxu0 0.0
    %1499 = vmatpush1.msra.mxu0 0.0
    %1500 = vmatprep.subr.mxu0 0.0
    %1501 = vmatpush1.msra.mxu0 0.0
    %1502 = vmatprep.subr.mxu0 0.0
    %1503 = vmatpush1.msra.mxu0 0.0
    %1504 = vmatprep.subr.mxu0 0.0
    %1505 = vmatpush1.msra.mxu0 0.0
    %1506 = vmatprep.subr.mxu0 0.0
    %1507 = vmatpush1.msra.mxu0 0.0
    %1508 = vmatprep.subr.mxu0 0.0
    %1509 = vmatpush1.msra.mxu0 0.0
    %1510 = vmatprep.mubr.f32.mxu0 0.0
    %1511 = vmatmul.mubr.f32.gmra.mrb[0].mxu0 %v626
    %v1512 = vpop.f32.mrb[0].mxu0
    %v1513 = vadd.f32 0.0, %v1512
    %v1514 = vpop.f32.mrb[0].mxu0
    %1515 = vmatprep.mubr.f32.mxu0 0.0
    %1516 = vmatmul.mubr.f32.gmra.mrb[0].mxu0 %v629
    %v1517 = vpop.f32.mrb[0].mxu0
    %v1518 = vadd.f32 0.0, %v1517
    %v1519 = vpop.f32.mrb[0].mxu0
    %1520 = vdwg.mxu0
    %v1521 = vld [vmem:[%s3] sm:$0xff]
    %v1522 = vld [vmem:[%s3 + $0x8] sm:$0xff]
    %v1523 = vld [vmem:[%s3 + $0x10] sm:$0xff]
    %v1524 = vld [vmem:[%s3 + $0x18] sm:$0xff]
    %v1525 = vlaneseq
    %v1526 = vshrl.u32 %v1525, 7
    %v1527 = vsub.s32 0, %v1526
    %v1528 = vrot.slane %v22, %v1527
    %vm1529 = vcmask 261120
    %v1531 = vsel %vm1529, %v988, 0
    %v1534 = vsel %vm1529, %v993, 0
    %v1537 = vsel %vm1529, %v1063, 0
    %v1540 = vsel %vm1529, %v1068, 0
    %v1543 = vsel %vm1529, %v1138, 0
    %v1546 = vsel %vm1529, %v1143, 0
    %v1549 = vsel %vm1529, %v1213, 0
    %v1552 = vsel %vm1529, %v1218, 0
    %v1555 = vsel %vm1529, %v1288, 0
    %v1558 = vsel %vm1529, %v1293, 0
    %v1561 = vsel %vm1529, %v1363, 0
    %v1564 = vsel %vm1529, %v1368, 0
    %v1567 = vsel %vm1529, %v1438, 0
    %v1570 = vsel %vm1529, %v1443, 0
    %v1573 = vsel %vm1529, %v1513, 0
    %v1576 = vsel %vm1529, %v1518, 0
    %1578 = vmatprep.subr.mxu0 0.0
    %1579 = vmatpush1.msra.mxu0 %v1521
    %1580 = vmatprep.subr.mxu0 0.0
    %1581 = vmatpush1.msra.mxu0 %v1522
    %1582 = vmatprep.subr.mxu0 0.0
    %1583 = vmatpush1.msra.mxu0 %v1523
    %1584 = vmatprep.subr.mxu0 0.0
    %1585 = vmatpush1.msra.mxu0 %v1524
    %1586 = vmatprep.subr.mxu0 0.0
    %1587 = vmatpush1.msra.mxu0 0.0
    %1588 = vmatprep.subr.mxu0 0.0
    %1589 = vmatpush1.msra.mxu0 0.0
    %1590 = vmatprep.subr.mxu0 0.0
    %1591 = vmatpush1.msra.mxu0 0.0
    %1592 = vmatprep.subr.mxu0 0.0
    %1593 = vmatpush1.msra.mxu0 0.0
    %1594 = vmatprep.subr.mxu0 0.0
    %1595 = vmatpush1.msra.mxu0 0.0
    %1596 = vmatprep.subr.mxu0 0.0
    %1597 = vmatpush1.msra.mxu0 0.0
    %1598 = vmatprep.subr.mxu0 0.0
    %1599 = vmatpush1.msra.mxu0 0.0
    %1600 = vmatprep.subr.mxu0 0.0
    %1601 = vmatpush1.msra.mxu0 0.0
    %1602 = vmatprep.subr.mxu0 0.0
    %1603 = vmatpush1.msra.mxu0 0.0
    %1604 = vmatprep.subr.mxu0 0.0
    %1605 = vmatpush1.msra.mxu0 0.0
    %1606 = vmatprep.subr.mxu0 0.0
    %1607 = vmatpush1.msra.mxu0 0.0
    %1608 = vmatprep.subr.mxu0 0.0
    %1609 = vmatpush1.msra.mxu0 0.0
    %1610 = vmatprep.subr.mxu0 0.0
    %1611 = vmatpush1.msra.mxu0 0.0
    %1612 = vmatprep.subr.mxu0 0.0
    %1613 = vmatpush1.msra.mxu0 0.0
    %1614 = vmatprep.subr.mxu0 0.0
    %1615 = vmatpush1.msra.mxu0 0.0
    %1616 = vmatprep.subr.mxu0 0.0
    %1617 = vmatpush1.msra.mxu0 0.0
    %1618 = vmatprep.subr.mxu0 0.0
    %1619 = vmatpush1.msra.mxu0 0.0
    %1620 = vmatprep.subr.mxu0 0.0
    %1621 = vmatpush1.msra.mxu0 0.0
    %1622 = vmatprep.subr.mxu0 0.0
    %1623 = vmatpush1.msra.mxu0 0.0
    %1624 = vmatprep.subr.mxu0 0.0
    %1625 = vmatpush1.msra.mxu0 0.0
    %1626 = vmatprep.subr.mxu0 0.0
    %1627 = vmatpush1.msra.mxu0 0.0
    %1628 = vmatprep.subr.mxu0 0.0
    %1629 = vmatpush1.msra.mxu0 0.0
    %1630 = vmatprep.subr.mxu0 0.0
    %1631 = vmatpush1.msra.mxu0 0.0
    %1632 = vmatprep.subr.mxu0 0.0
    %1633 = vmatpush1.msra.mxu0 0.0
    %1634 = vmatprep.subr.mxu0 0.0
    %1635 = vmatpush1.msra.mxu0 0.0
    %1636 = vmatprep.subr.mxu0 0.0
    %1637 = vmatpush1.msra.mxu0 0.0
    %1638 = vmatprep.subr.mxu0 0.0
    %1639 = vmatpush1.msra.mxu0 0.0
    %1640 = vmatprep.subr.mxu0 0.0
    %1641 = vmatpush1.msra.mxu0 0.0
    %1642 = vmatprep.mubr.f32.mxu0 0.0
    %1643 = vmatmul.mubr.f32.gmra.mrb[0].mxu0 %v1531
    %v1644 = vpop.f32.mrb[0].mxu0
    %v1645 = vadd.f32 %v1528, %v1644
    %v1646 = vpop.f32.mrb[0].mxu0
    %1647 = vmatprep.mubr.f32.mxu0 0.0
    %1648 = vmatmul.mubr.f32.gmra.mrb[0].mxu0 %v1534
    %v1649 = vpop.f32.mrb[0].mxu0
    %v1650 = vadd.f32 %v1528, %v1649
    %v1651 = vpop.f32.mrb[0].mxu0
    %1652 = vmatprep.mubr.f32.mxu0 0.0
    %1653 = vmatmul.mubr.f32.gmra.mrb[0].mxu0 %v1537
    %v1654 = vpop.f32.mrb[0].mxu0
    %v1655 = vadd.f32 %v1528, %v1654
    %v1656 = vpop.f32.mrb[0].mxu0
    %1657 = vmatprep.mubr.f32.mxu0 0.0
    %1658 = vmatmul.mubr.f32.gmra.mrb[0].mxu0 %v1540
    %v1659 = vpop.f32.mrb[0].mxu0
    %v1660 = vadd.f32 %v1528, %v1659
    %v1661 = vpop.f32.mrb[0].mxu0
    %1662 = vmatprep.mubr.f32.mxu0 0.0
    %1663 = vmatmul.mubr.f32.gmra.mrb[0].mxu0 %v1543
    %v1664 = vpop.f32.mrb[0].mxu0
    %v1665 = vadd.f32 %v1528, %v1664
    %v1666 = vpop.f32.mrb[0].mxu0
    %1667 = vmatprep.mubr.f32.mxu0 0.0
    %1668 = vmatmul.mubr.f32.gmra.mrb[0].mxu0 %v1546
    %v1669 = vpop.f32.mrb[0].mxu0
    %v1670 = vadd.f32 %v1528, %v1669
    %v1671 = vpop.f32.mrb[0].mxu0
    %1672 = vmatprep.mubr.f32.mxu0 0.0
    %1673 = vmatmul.mubr.f32.gmra.mrb[0].mxu0 %v1549
    %v1674 = vpop.f32.mrb[0].mxu0
    %v1675 = vadd.f32 %v1528, %v1674
    %v1676 = vpop.f32.mrb[0].mxu0
    %1677 = vmatprep.mubr.f32.mxu0 0.0
    %1678 = vmatmul.mubr.f32.gmra.mrb[0].mxu0 %v1552
    %v1679 = vpop.f32.mrb[0].mxu0
    %v1680 = vadd.f32 %v1528, %v1679
    %v1681 = vpop.f32.mrb[0].mxu0
    %1682 = vmatprep.mubr.f32.mxu0 0.0
    %1683 = vmatmul.mubr.f32.gmra.mrb[0].mxu0 %v1555
    %v1684 = vpop.f32.mrb[0].mxu0
    %v1685 = vadd.f32 %v1528, %v1684
    %v1686 = vpop.f32.mrb[0].mxu0
    %1687 = vmatprep.mubr.f32.mxu0 0.0
    %1688 = vmatmul.mubr.f32.gmra.mrb[0].mxu0 %v1558
    %v1689 = vpop.f32.mrb[0].mxu0
    %v1690 = vadd.f32 %v1528, %v1689
    %v1691 = vpop.f32.mrb[0].mxu0
    %1692 = vmatprep.mubr.f32.mxu0 0.0
    %1693 = vmatmul.mubr.f32.gmra.mrb[0].mxu0 %v1561
    %v1694 = vpop.f32.mrb[0].mxu0
    %v1695 = vadd.f32 %v1528, %v1694
    %v1696 = vpop.f32.mrb[0].mxu0
    %1697 = vmatprep.mubr.f32.mxu0 0.0
    %1698 = vmatmul.mubr.f32.gmra.mrb[0].mxu0 %v1564
    %v1699 = vpop.f32.mrb[0].mxu0
    %v1700 = vadd.f32 %v1528, %v1699
    %v1701 = vpop.f32.mrb[0].mxu0
    %1702 = vmatprep.mubr.f32.mxu0 0.0
    %1703 = vmatmul.mubr.f32.gmra.mrb[0].mxu0 %v1567
    %v1704 = vpop.f32.mrb[0].mxu0
    %v1705 = vadd.f32 %v1528, %v1704
    %v1706 = vpop.f32.mrb[0].mxu0
    %1707 = vmatprep.mubr.f32.mxu0 0.0
    %1708 = vmatmul.mubr.f32.gmra.mrb[0].mxu0 %v1570
    %v1709 = vpop.f32.mrb[0].mxu0
    %v1710 = vadd.f32 %v1528, %v1709
    %v1711 = vpop.f32.mrb[0].mxu0
    %1712 = vmatprep.mubr.f32.mxu0 0.0
    %1713 = vmatmul.mubr.f32.gmra.mrb[0].mxu0 %v1573
    %v1714 = vpop.f32.mrb[0].mxu0
    %v1715 = vadd.f32 %v1528, %v1714
    %v1716 = vpop.f32.mrb[0].mxu0
    %1717 = vmatprep.mubr.f32.mxu0 0.0
    %1718 = vmatmul.mubr.f32.gmra.mrb[0].mxu0 %v1576
    %v1719 = vpop.f32.mrb[0].mxu0
    %v1720 = vadd.f32 %v1528, %v1719
    %v1721 = vpop.f32.mrb[0].mxu0
    %1722 = vdwg.mxu0
    %v1723 = vmax.f32 %v1645, 0.0
    %v1724 = vmax.f32 %v1650, 0.0
    %v1725 = vmax.f32 %v1655, 0.0
    %v1726 = vmax.f32 %v1660, 0.0
    %v1727 = vmax.f32 %v1665, 0.0
    %v1728 = vmax.f32 %v1670, 0.0
    %v1729 = vmax.f32 %v1675, 0.0
    %v1730 = vmax.f32 %v1680, 0.0
    %v1731 = vmax.f32 %v1685, 0.0
    %v1732 = vmax.f32 %v1690, 0.0
    %v1733 = vmax.f32 %v1695, 0.0
    %v1734 = vmax.f32 %v1700, 0.0
    %v1735 = vmax.f32 %v1705, 0.0
    %v1736 = vmax.f32 %v1710, 0.0
    %v1737 = vmax.f32 %v1715, 0.0
    %v1738 = vmax.f32 %v1720, 0.0
    %v1739 = vsel %vm1529, %v1723, 0.0
    %v1740 = vsel %vm1529, %v1724, 0.0
    %v1741 = vadd.f32 %v1739, %v1740
    %v1742 = vrot.slane %v1741, 4
    %v1743 = vadd.f32 %v1741, %v1742
    %v1744 = vrot.slane %v1743, 2
    %v1745 = vadd.f32 %v1743, %v1744
    %v1746 = vrot.slane %v1745, 1
    %v1747 = vadd.f32 %v1745, %v1746
    %v1748 = vsel %vm1529, %v1725, 0.0
    %v1749 = vsel %vm1529, %v1726, 0.0
    %v1750 = vadd.f32 %v1748, %v1749
    %v1751 = vrot.slane %v1750, 4
    %v1752 = vadd.f32 %v1750, %v1751
    %v1753 = vrot.slane %v1752, 2
    %v1754 = vadd.f32 %v1752, %v1753
    %v1755 = vrot.slane %v1754, 1
    %v1756 = vadd.f32 %v1754, %v1755
    %v1757 = vsel %vm1529, %v1727, 0.0
    %v1758 = vsel %vm1529, %v1728, 0.0
    %v1759 = vadd.f32 %v1757, %v1758
    %v1760 = vrot.slane %v1759, 4
    %v1761 = vadd.f32 %v1759, %v1760
    %v1762 = vrot.slane %v1761, 2
    %v1763 = vadd.f32 %v1761, %v1762
    %v1764 = vrot.slane %v1763, 1
    %v1765 = vadd.f32 %v1763, %v1764
    %v1766 = vsel %vm1529, %v1729, 0.0
    %v1767 = vsel %vm1529, %v1730, 0.0
    %v1768 = vadd.f32 %v1766, %v1767
    %v1769 = vrot.slane %v1768, 4
    %v1770 = vadd.f32 %v1768, %v1769
    %v1771 = vrot.slane %v1770, 2
    %v1772 = vadd.f32 %v1770, %v1771
    %v1773 = vrot.slane %v1772, 1
    %v1774 = vadd.f32 %v1772, %v1773
    %v1775 = vsel %vm1529, %v1731, 0.0
    %v1776 = vsel %vm1529, %v1732, 0.0
    %v1777 = vadd.f32 %v1775, %v1776
    %v1778 = vrot.slane %v1777, 4
    %v1779 = vadd.f32 %v1777, %v1778
    %v1780 = vrot.slane %v1779, 2
    %v1781 = vadd.f32 %v1779, %v1780
    %v1782 = vrot.slane %v1781, 1
    %v1783 = vadd.f32 %v1781, %v1782
    %v1784 = vsel %vm1529, %v1733, 0.0
    %v1785 = vsel %vm1529, %v1734, 0.0
    %v1786 = vadd.f32 %v1784, %v1785
    %v1787 = vrot.slane %v1786, 4
    %v1788 = vadd.f32 %v1786, %v1787
    %v1789 = vrot.slane %v1788, 2
    %v1790 = vadd.f32 %v1788, %v1789
    %v1791 = vrot.slane %v1790, 1
    %v1792 = vadd.f32 %v1790, %v1791
    %v1793 = vsel %vm1529, %v1735, 0.0
    %v1794 = vsel %vm1529, %v1736, 0.0
    %v1795 = vadd.f32 %v1793, %v1794
    %v1796 = vrot.slane %v1795, 4
    %v1797 = vadd.f32 %v1795, %v1796
    %v1798 = vrot.slane %v1797, 2
    %v1799 = vadd.f32 %v1797, %v1798
    %v1800 = vrot.slane %v1799, 1
    %v1801 = vadd.f32 %v1799, %v1800
    %v1802 = vsel %vm1529, %v1737, 0.0
    %v1803 = vsel %vm1529, %v1738, 0.0
    %v1804 = vadd.f32 %v1802, %v1803
    %v1805 = vrot.slane %v1804, 4
    %v1806 = vadd.f32 %v1804, %v1805
    %v1807 = vrot.slane %v1806, 2
    %v1808 = vadd.f32 %v1806, %v1807
    %v1809 = vrot.slane %v1808, 1
    %v1810 = vadd.f32 %v1808, %v1809
    %v1811 = vrcp.pop 16.0
    %v1812 = vmul.f32 %v1747, %v1811
    %v1813 = vmul.f32 %v1756, %v1811
    %v1814 = vmul.f32 %v1765, %v1811
    %v1815 = vmul.f32 %v1774, %v1811
    %v1816 = vmul.f32 %v1783, %v1811
    %v1817 = vmul.f32 %v1792, %v1811
    %v1818 = vmul.f32 %v1801, %v1811
    %v1819 = vmul.f32 %v1810, %v1811
    %1821 = vset.pattern.permute.xlu0 0
    %1822 = vperm.xlu0 %1821, %v24
    %v1823 = vpop.permute.xlu0 %1822
    %vm1833 = vcmask 1041409
    %v1834 = vsel %vm1833, %v1813, %v1812
    %vm1835 = vcmask 1042434
    %v1836 = vsel %vm1835, %v1814, %v1834
    %vm1837 = vcmask 1043459
    %v1838 = vsel %vm1837, %v1815, %v1836
    %vm1839 = vcmask 1044484
    %v1840 = vsel %vm1839, %v1816, %v1838
    %vm1841 = vcmask 1045509
    %v1842 = vsel %vm1841, %v1817, %v1840
    %vm1843 = vcmask 1046534
    %v1844 = vsel %vm1843, %v1818, %v1842
    %vm1845 = vcmask 1047559
    %v1846 = vsel %vm1845, %v1819, %v1844
    %v1848 = vsel %vm1529, %v23, 0
    %v1850 = vsel %vm1529, %v1846, 0
    %1852 = vmatprep.subr.mxu0 0.0
    %1853 = vmatpush1.xpose.msra.mxu0 %v1850
    %1854 = vmatprep.subr.mxu0 0.0
    %1855 = vmatpush1.xpose.msra.mxu0 0.0
    %1856 = vmatprep.subr.mxu0 0.0
    %1857 = vmatpush1.xpose.msra.mxu0 0.0
    %1858 = vmatprep.subr.mxu0 0.0
    %1859 = vmatpush1.xpose.msra.mxu0 0.0
    %1860 = vmatprep.subr.mxu0 0.0
    %1861 = vmatpush1.xpose.msra.mxu0 0.0
    %1862 = vmatprep.subr.mxu0 0.0
    %1863 = vmatpush1.xpose.msra.mxu0 0.0
    %1864 = vmatprep.subr.mxu0 0.0
    %1865 = vmatpush1.xpose.msra.mxu0 0.0
    %1866 = vmatprep.subr.mxu0 0.0
    %1867 = vmatpush1.xpose.msra.mxu0 0.0
    %1868 = vmatprep.subr.mxu0 0.0
    %1869 = vmatpush1.xpose.msra.mxu0 0.0
    %1870 = vmatprep.subr.mxu0 0.0
    %1871 = vmatpush1.xpose.msra.mxu0 0.0
    %1872 = vmatprep.subr.mxu0 0.0
    %1873 = vmatpush1.xpose.msra.mxu0 0.0
    %1874 = vmatprep.subr.mxu0 0.0
    %1875 = vmatpush1.xpose.msra.mxu0 0.0
    %1876 = vmatprep.subr.mxu0 0.0
    %1877 = vmatpush1.xpose.msra.mxu0 0.0
    %1878 = vmatprep.subr.mxu0 0.0
    %1879 = vmatpush1.xpose.msra.mxu0 0.0
    %1880 = vmatprep.subr.mxu0 0.0
    %1881 = vmatpush1.xpose.msra.mxu0 0.0
    %1882 = vmatprep.subr.mxu0 0.0
    %1883 = vmatpush1.xpose.msra.mxu0 0.0
    %1884 = vmatprep.subr.mxu0 0.0
    %1885 = vmatpush1.xpose.msra.mxu0 0.0
    %1886 = vmatprep.subr.mxu0 0.0
    %1887 = vmatpush1.xpose.msra.mxu0 0.0
    %1888 = vmatprep.subr.mxu0 0.0
    %1889 = vmatpush1.xpose.msra.mxu0 0.0
    %1890 = vmatprep.subr.mxu0 0.0
    %1891 = vmatpush1.xpose.msra.mxu0 0.0
    %1892 = vmatprep.subr.mxu0 0.0
    %1893 = vmatpush1.xpose.msra.mxu0 0.0
    %1894 = vmatprep.subr.mxu0 0.0
    %1895 = vmatpush1.xpose.msra.mxu0 0.0
    %1896 = vmatprep.subr.mxu0 0.0
    %1897 = vmatpush1.xpose.msra.mxu0 0.0
    %1898 = vmatprep.subr.mxu0 0.0
    %1899 = vmatpush1.xpose.msra.mxu0 0.0
    %1900 = vmatprep.subr.mxu0 0.0
    %1901 = vmatpush1.xpose.msra.mxu0 0.0
    %1902 = vmatprep.subr.mxu0 0.0
    %1903 = vmatpush1.xpose.msra.mxu0 0.0
    %1904 = vmatprep.subr.mxu0 0.0
    %1905 = vmatpush1.xpose.msra.mxu0 0.0
    %1906 = vmatprep.subr.mxu0 0.0
    %1907 = vmatpush1.xpose.msra.mxu0 0.0
    %1908 = vmatprep.subr.mxu0 0.0
    %1909 = vmatpush1.xpose.msra.mxu0 0.0
    %1910 = vmatprep.subr.mxu0 0.0
    %1911 = vmatpush1.xpose.msra.mxu0 0.0
    %1912 = vmatprep.subr.mxu0 0.0
    %1913 = vmatpush1.xpose.msra.mxu0 0.0
    %1914 = vmatprep.subr.mxu0 0.0
    %1915 = vmatpush1.xpose.msra.mxu0 0.0
    %1916 = vmatprep.mubr.f32.mxu0 0.0
    %1917 = vmatmul.mubr.f32.gmra.mrb[0].mxu0 %v1848
    %v1918 = vpop.f32.mrb[0].mxu0
    %v1919 = vadd.f32 %v1823, %v1918
    %v1920 = vpop.f32.mrb[0].mxu0
    %1921 = vdwg.mxu0
    %vm1922 = vcmask 57344
    %1923 = vst.msk [vmem:[#allocation2] sm:$0x1] %vm1922, %v1919
    // Predicated region
    $region22: #{tpu_custom_call.1} parent=1 // pred_check
      _
    $region23: #{tpu_custom_call.1} parent=1 // pred_check_branch
      %1925 = sbr.rel (0) target = $region25
    $region24: #{tpu_custom_call.1} parent=1 // pred_region
      %s1927 = ssub.s32 16, 16
      %1928 = vsyncadd [#allocation3], %s1927
      %s1930 = sshll.u32 [#allocation2], 4
      %s1931 = int_to_ptr.vmem [resolvable:$true] %s1930
      %1933 = dma.vmem_to_hbm [thread:$0]  %s1931, 16, %s5, [#allocation3]
    $region25: #{tpu_custom_call.1} parent=1 // pred_fallthru
      _
    // Predicated region
    $region26: #{tpu_custom_call.1} parent=1 // pred_check
      _
    $region27: #{tpu_custom_call.1} parent=1 // pred_check_branch
      %1935 = sbr.rel (0) target = $region29
    $region28: #{tpu_custom_call.1} parent=1 // pred_region
      %1936 = dma.done [#allocation3], 16
    $region29: #{tpu_custom_call.1} parent=1 // pred_fallthru
      _
    %1937 = vsyncpa [#allocation3], 1

</llo_original>
